<compile_context>
chip_gen: v7x
topology: tpu7x:2x2x1
jax: 0.10.0
libtpu: 0.0.40
codegen_flags: <defaults>
</compile_context>

<pallas_src>
import jax
import jax.numpy as jnp
from jax.experimental import pallas as pl
from jax.experimental.pallas import tpu as pltpu

INPUT_SIZE = 16
HIDDEN = 32

LHS_WIDTH = 128                       # matmul K, lane width of x rows / h carry / output rows
ROW_H = 0                             # h occupies LHS lanes [0, 32)
ROW_X = HIDDEN                        # x occupies LHS lanes [32, 48)
GATE_TILE = 128                       # each gate block gets its own 128-lane tile
NUM_GATE_BLOCKS = 4                   # rz-fused layout: [r_pre, z_pre, gx_n, gh_n]
NG = NUM_GATE_BLOCKS * GATE_TILE      # 512


# ---------------------------------------------------------------------------
# Kernel: whole sequence in one invocation, time loop inside, h carried as value
# ---------------------------------------------------------------------------
def encoder_gru_kernel(x_ref, h0_ref, w_ref, b_ref, out_ref):
    T = out_ref.shape[0]
    H = HIDDEN

    w = w_ref[...]                                          # (128, 512) bf16, resident
    b = b_ref[...]                                          # (1, 512)  f32 gate biases
    lane = jax.lax.broadcasted_iota(jnp.int32, (1, LHS_WIDTH), 1)
    h_lanes = lane < H                                      # lanes [0,32): hidden carry

    def step(t, h):                                         # h: (1,128) f32, lanes>=32 == 0
        x_row = x_ref[pl.ds(t, 1), :]                       # (1,128): x at lanes [32,48)
        lhs = jnp.where(h_lanes, h, x_row)                  # [h | x | 0...]  (one select)
        g = jnp.dot(lhs.astype(jnp.bfloat16), w,
                    preferred_element_type=jnp.float32) + b  # (1, 512) f32

        # Gate blocks (128-lane tile-aligned slices, no cross-lane rotates):
        r = jax.nn.sigmoid(g[:, 0 * GATE_TILE:1 * GATE_TILE])   # r_pre = x/h fused
        z = jax.nn.sigmoid(g[:, 1 * GATE_TILE:2 * GATE_TILE])   # z_pre = x/h fused
        gx_n = g[:, 2 * GATE_TILE:3 * GATE_TILE]
        gh_n = g[:, 3 * GATE_TILE:4 * GATE_TILE]
        n = jnp.tanh(gx_n + r * gh_n)                        # PyTorch GRU: b_hn inside r*(.)
        h_new = (1.0 - z) * n + z * h                        # lanes >= 32 remain exactly 0

        out_ref[pl.ds(t, 1), :] = h_new                      # full 128-lane VMEM store
        return h_new

    unroll = T if T <= 32 else 8                             # LLO visibility
    jax.lax.fori_loop(0, T, step, h0_ref[...], unroll=unroll)


# ---------------------------------------------------------------------------
# Parameter init (PyTorch-shaped) and packing into the fused (128, 512) matrix
# ---------------------------------------------------------------------------
def init_torch_style_params(key, input_size=INPUT_SIZE, hidden=HIDDEN):
    ks = jax.random.split(key, 10)
    s = 0.1

    def w(k, shape):
        return (s * jax.random.normal(k, shape)).astype(jnp.float32)

    return dict(
        w1=w(ks[0], (hidden, input_size)),      b1=w(ks[1], (hidden,)),
        w2=w(ks[2], (2 * hidden, hidden)),      b2=w(ks[3], (2 * hidden,)),
        w3=w(ks[4], (hidden, 2 * hidden)),      b3=w(ks[5], (hidden,)),
        w_ih=w(ks[6], (3 * hidden, hidden)),    b_ih=w(ks[7], (3 * hidden,)),
        w_hh=w(ks[8], (3 * hidden, hidden)),    b_hh=w(ks[9], (3 * hidden,)),
    )


def pack_params(p):
    """Fold 3 Linears + W_ih, fuse x/h weights per gate -> (128, 512) bf16 W + (1, 512) f32 bias."""
    H = HIDDEN
    # embedding is Linear->Linear->Linear with NO activation between: exact algebraic fold.
    A = p["w1"].T @ p["w2"].T @ p["w3"].T                                   # (16, 32)
    c = (p["b1"] @ p["w2"].T + p["b2"]) @ p["w3"].T + p["b3"]               # (32,)
    # fold into GRU input projection: gx = x @ Wx + bx  (PyTorch gate order r, z, n)
    Wx = A @ p["w_ih"].T                                                    # (16, 96)
    bx = c @ p["w_ih"].T + p["b_ih"]                                        # (96,)
    Wh = p["w_hh"].T                                                        # (32, 96)
    bh = p["b_hh"]                                                          # (96,)

    W = jnp.zeros((LHS_WIDTH, NG), jnp.float32)
    bias = jnp.zeros((1, NG), jnp.float32)

    def put(block, wx_cols, wh_cols, b_vals):
        nonlocal W, bias
        c0 = block * GATE_TILE
        if wh_cols is not None:
            W = W.at[ROW_H:ROW_H + H, c0:c0 + H].set(wh_cols)
        if wx_cols is not None:
            W = W.at[ROW_X:ROW_X + INPUT_SIZE, c0:c0 + H].set(wx_cols)
        bias = bias.at[0, c0:c0 + H].set(b_vals)

    g = lambda j: slice(j * H, (j + 1) * H)
    put(0, Wx[:, g(0)], Wh[:, g(0)], bx[g(0)] + bh[g(0)])   # r_pre  (x + h contributions fused)
    put(1, Wx[:, g(1)], Wh[:, g(1)], bx[g(1)] + bh[g(1)])   # z_pre  (x + h contributions fused)
    put(2, Wx[:, g(2)], None,        bx[g(2)])              # gx_n
    put(3, None,        Wh[:, g(2)], bh[g(2)])              # gh_n   (b_hn stays inside r*(.))
    return W.astype(jnp.bfloat16), bias


# ---------------------------------------------------------------------------
# Wrappers
# ---------------------------------------------------------------------------
def encoder_rnn_sequence(xs, hidden, packed):
    """xs: (T, INPUT_SIZE); hidden: (1, 1, HIDDEN).
    Returns (outputs (T, 1, HIDDEN), final hidden (1, 1, HIDDEN))."""
    packed_w, packed_b = packed
    T = xs.shape[0]

    x_pack = jnp.zeros((T, LHS_WIDTH), jnp.float32)
    x_pack = x_pack.at[:, ROW_X:ROW_X + INPUT_SIZE].set(xs.astype(jnp.float32))
    h0_pack = jnp.zeros((1, LHS_WIDTH), jnp.float32)
    h0_pack = h0_pack.at[:, :HIDDEN].set(hidden.reshape(1, HIDDEN).astype(jnp.float32))

    out = pl.pallas_call(
        encoder_gru_kernel,
        out_shape=jax.ShapeDtypeStruct((T, LHS_WIDTH), jnp.float32),
        grid_spec=pltpu.PrefetchScalarGridSpec(
            num_scalar_prefetch=0,
            grid=(1,),                                              # time loop lives in-kernel
            in_specs=[
                pl.BlockSpec((T, LHS_WIDTH), lambda i: (0, 0)),     # xs block, VMEM-resident
                pl.BlockSpec((1, LHS_WIDTH), lambda i: (0, 0)),     # h0
                pl.BlockSpec((LHS_WIDTH, NG), lambda i: (0, 0)),    # packed weights (bf16)
                pl.BlockSpec((1, NG), lambda i: (0, 0)),            # gate biases (f32)
            ],
            out_specs=pl.BlockSpec((T, LHS_WIDTH), lambda i: (0, 0)),  # lane-dense (T,128)
        ),
        compiler_params=pltpu.CompilerParams(dimension_semantics=("arbitrary",)),
    )(x_pack, h0_pack, packed_w, packed_b)

    outputs = out[:, :HIDDEN].reshape(T, 1, HIDDEN)
    return outputs, outputs[-1].reshape(1, 1, HIDDEN)


def encoder_rnn_forward(x, hidden, packed):
    """Single step matching EncoderRNN.forward: x (1, INPUT_SIZE), hidden (1,1,HIDDEN)."""
    outs, h_new = encoder_rnn_sequence(x.reshape(1, INPUT_SIZE), hidden, packed)
    return outs.reshape(1, 1, HIDDEN), h_new


# ---------------------------------------------------------------------------
# Pure-JAX unfused reference (PyTorch semantics, f32) for a tolerance check
# ---------------------------------------------------------------------------
def reference_step(x, h, p):
    e = x @ p["w1"].T + p["b1"]
    e = e @ p["w2"].T + p["b2"]
    e = e @ p["w3"].T + p["b3"]
    gx = e @ p["w_ih"].T + p["b_ih"]
    gh = h @ p["w_hh"].T + p["b_hh"]
    H = HIDDEN
    r = jax.nn.sigmoid(gx[:, :H] + gh[:, :H])
    z = jax.nn.sigmoid(gx[:, H:2 * H] + gh[:, H:2 * H])
    n = jnp.tanh(gx[:, 2 * H:] + r * gh[:, 2 * H:])
    return (1.0 - z) * n + z * h


if __name__ == "__main__":
    key = jax.random.PRNGKey(0)
    k_params, k_x = jax.random.split(key)

    params = init_torch_style_params(k_params)
    packed = pack_params(params)

    SEQ = 8
    xs = jax.random.normal(k_x, (SEQ, INPUT_SIZE), dtype=jnp.float32)
    h0 = jnp.zeros((1, 1, HIDDEN), dtype=jnp.float32)   # initHidden()

    outputs, hidden = encoder_rnn_sequence(xs, h0, packed)
    jax.block_until_ready((outputs, hidden))

    # --- correctness check against the unfused f32 reference ---
    h = h0.reshape(1, HIDDEN)
    ref = []
    for t in range(SEQ):
        h = reference_step(xs[t:t + 1], h, params)
        ref.append(h)
    ref = jnp.stack(ref, axis=0)                         # (SEQ, 1, HIDDEN)

    assert outputs.shape == (SEQ, 1, HIDDEN) and hidden.shape == (1, 1, HIDDEN)
    assert bool(jnp.all(jnp.isfinite(outputs))) and bool(jnp.all(jnp.isfinite(hidden)))
    # Tolerance 2e-3: weights/LHS go through the MXU in bf16 (f32 accumulation,
    # f32 biases), which adds a few e-4 vs the pure-f32 unfused reference.
    max_err = float(jnp.max(jnp.abs(outputs - ref)))
    assert max_err < 2e-3, f"mismatch vs reference: {max_err}"
    assert bool(jnp.allclose(hidden.reshape(1, HIDDEN), h, atol=2e-3))

    print("KERNEL_OK")
</pallas_src>

<mosaic_0001>
module attributes {stable_mosaic.version = 11 : i64} {
  func.func @encoder_gru_kernel(%arg0: i32, %arg1: memref<8x128xf32, #tpu.memory_space<vmem>>, %arg2: memref<1x128xf32, #tpu.memory_space<vmem>>, %arg3: memref<128x512xbf16, #tpu.memory_space<vmem>>, %arg4: memref<1x512xf32, #tpu.memory_space<vmem>>, %arg5: memref<8x128xf32, #tpu.memory_space<vmem>>) attributes {dimension_semantics = [#tpu.dimension_semantics<arbitrary>], iteration_bounds = array<i64: 1>, scalar_prefetch = 0 : i64, scratch_operands = 0 : i64, tpu.core_type = #tpu.core_type<tc>, window_params = [{pipeline_mode = #tpu.pipeline_mode<synchronous>, transform_indices = @transform_0, window_bounds = array<i64: 8, 128>}, {pipeline_mode = #tpu.pipeline_mode<synchronous>, transform_indices = @transform_1, window_bounds = array<i64: 1, 128>}, {pipeline_mode = #tpu.pipeline_mode<synchronous>, transform_indices = @transform_2, window_bounds = array<i64: 128, 512>}, {pipeline_mode = #tpu.pipeline_mode<synchronous>, transform_indices = @transform_3, window_bounds = array<i64: 1, 512>}, {pipeline_mode = #tpu.pipeline_mode<synchronous>, transform_indices = @transform_4, window_bounds = array<i64: 8, 128>}]} {
    %c0 = arith.constant 0 : index
    %c0_0 = arith.constant 0 : index
    %0 = vector.load %arg3[%c0, %c0_0] : memref<128x512xbf16, #tpu.memory_space<vmem>>, vector<128x512xbf16>
    %c0_1 = arith.constant 0 : index
    %c0_2 = arith.constant 0 : index
    %1 = vector.load %arg4[%c0_1, %c0_2] : memref<1x512xf32, #tpu.memory_space<vmem>>, vector<1x512xf32>
    %2 = tpu.iota {dimensions = array<i32: 1>} : vector<1x128xi32>
    %c32_i32 = arith.constant 32 : i32
    %3 = vector.broadcast %c32_i32 : i32 to vector<1x128xi32>
    %4 = arith.cmpi slt, %2, %3 : vector<1x128xi32>
    %c0_3 = arith.constant 0 : index
    %c0_4 = arith.constant 0 : index
    %5 = vector.load %arg2[%c0_3, %c0_4] : memref<1x128xf32, #tpu.memory_space<vmem>>, vector<1x128xf32>
    %c0_i32 = arith.constant 0 : i32
    %6 = arith.index_cast %c0_i32 : i32 to index
    %c0_5 = arith.constant 0 : index
    %7 = vector.load %arg1[%6, %c0_5] : memref<8x128xf32, #tpu.memory_space<vmem>>, vector<1x128xf32>
    %8 = arith.select %4, %5, %7 : vector<1x128xi1>, vector<1x128xf32>
    %9 = arith.truncf %8 : vector<1x128xf32> to vector<1x128xbf16>
    %cst = arith.constant dense<0.000000e+00> : vector<1x512xf32>
    %10 = tpu.matmul %9, %0, %cst {dimension_numbers = #tpu.dot_dimension_numbers<[1], [0], [0], [1], [0, 0, 1, 1], [], []>} : vector<1x128xbf16>, vector<128x512xbf16>, vector<1x512xf32> -> vector<1x512xf32>
    %11 = arith.addf %10, %1 : vector<1x512xf32>
    %12 = vector.extract_strided_slice %11 {offsets = [0, 0], sizes = [1, 128], strides = [1, 1]} : vector<1x512xf32> to vector<1x128xf32>
    %13 = arith.negf %12 : vector<1x128xf32>
    %14 = math.exp %13 : vector<1x128xf32>
    %cst_6 = arith.constant 1.000000e+00 : f32
    %15 = vector.broadcast %cst_6 : f32 to vector<1x128xf32>
    %16 = arith.addf %15, %14 : vector<1x128xf32>
    %17 = arith.divf %15, %16 : vector<1x128xf32>
    %18 = vector.extract_strided_slice %11 {offsets = [0, 128], sizes = [1, 128], strides = [1, 1]} : vector<1x512xf32> to vector<1x128xf32>
    %19 = arith.negf %18 : vector<1x128xf32>
    %20 = math.exp %19 : vector<1x128xf32>
    %cst_7 = arith.constant 1.000000e+00 : f32
    %21 = vector.broadcast %cst_7 : f32 to vector<1x128xf32>
    %22 = arith.addf %21, %20 : vector<1x128xf32>
    %23 = arith.divf %21, %22 : vector<1x128xf32>
    %24 = vector.extract_strided_slice %11 {offsets = [0, 256], sizes = [1, 128], strides = [1, 1]} : vector<1x512xf32> to vector<1x128xf32>
    %25 = vector.extract_strided_slice %11 {offsets = [0, 384], sizes = [1, 128], strides = [1, 1]} : vector<1x512xf32> to vector<1x128xf32>
    %26 = arith.mulf %17, %25 : vector<1x128xf32>
    %27 = arith.addf %24, %26 : vector<1x128xf32>
    %28 = math.tanh %27 : vector<1x128xf32>
    %cst_8 = arith.constant 1.000000e+00 : f32
    %29 = vector.broadcast %cst_8 : f32 to vector<1x128xf32>
    %30 = arith.subf %29, %23 : vector<1x128xf32>
    %31 = arith.mulf %30, %28 : vector<1x128xf32>
    %32 = arith.mulf %23, %5 : vector<1x128xf32>
    %33 = arith.addf %31, %32 : vector<1x128xf32>
    %34 = arith.index_cast %c0_i32 : i32 to index
    %c0_9 = arith.constant 0 : index
    %35 = vector.load %arg5[%34, %c0_9] : memref<8x128xf32, #tpu.memory_space<vmem>>, vector<1x128xf32>
    tpu.vector_store %arg5[%34, %c0_9], %33 {strides = array<i32>} : memref<8x128xf32, #tpu.memory_space<vmem>>, vector<1x128xf32>,
    %c1_i32 = arith.constant 1 : i32
    %36 = arith.index_cast %c1_i32 : i32 to index
    %c0_10 = arith.constant 0 : index
    %37 = vector.load %arg1[%36, %c0_10] : memref<8x128xf32, #tpu.memory_space<vmem>>, vector<1x128xf32>
    %38 = arith.select %4, %33, %37 : vector<1x128xi1>, vector<1x128xf32>
    %39 = arith.truncf %38 : vector<1x128xf32> to vector<1x128xbf16>
    %cst_11 = arith.constant dense<0.000000e+00> : vector<1x512xf32>
    %40 = tpu.matmul %39, %0, %cst_11 {dimension_numbers = #tpu.dot_dimension_numbers<[1], [0], [0], [1], [0, 0, 1, 1], [], []>} : vector<1x128xbf16>, vector<128x512xbf16>, vector<1x512xf32> -> vector<1x512xf32>
    %41 = arith.addf %40, %1 : vector<1x512xf32>
    %42 = vector.extract_strided_slice %41 {offsets = [0, 0], sizes = [1, 128], strides = [1, 1]} : vector<1x512xf32> to vector<1x128xf32>
    %43 = arith.negf %42 : vector<1x128xf32>
    %44 = math.exp %43 : vector<1x128xf32>
    %cst_12 = arith.constant 1.000000e+00 : f32
    %45 = vector.broadcast %cst_12 : f32 to vector<1x128xf32>
    %46 = arith.addf %45, %44 : vector<1x128xf32>
    %47 = arith.divf %45, %46 : vector<1x128xf32>
    %48 = vector.extract_strided_slice %41 {offsets = [0, 128], sizes = [1, 128], strides = [1, 1]} : vector<1x512xf32> to vector<1x128xf32>
    %49 = arith.negf %48 : vector<1x128xf32>
    %50 = math.exp %49 : vector<1x128xf32>
    %cst_13 = arith.constant 1.000000e+00 : f32
    %51 = vector.broadcast %cst_13 : f32 to vector<1x128xf32>
    %52 = arith.addf %51, %50 : vector<1x128xf32>
    %53 = arith.divf %51, %52 : vector<1x128xf32>
    %54 = vector.extract_strided_slice %41 {offsets = [0, 256], sizes = [1, 128], strides = [1, 1]} : vector<1x512xf32> to vector<1x128xf32>
    %55 = vector.extract_strided_slice %41 {offsets = [0, 384], sizes = [1, 128], strides = [1, 1]} : vector<1x512xf32> to vector<1x128xf32>
    %56 = arith.mulf %47, %55 : vector<1x128xf32>
    %57 = arith.addf %54, %56 : vector<1x128xf32>
    %58 = math.tanh %57 : vector<1x128xf32>
    %cst_14 = arith.constant 1.000000e+00 : f32
    %59 = vector.broadcast %cst_14 : f32 to vector<1x128xf32>
    %60 = arith.subf %59, %53 : vector<1x128xf32>
    %61 = arith.mulf %60, %58 : vector<1x128xf32>
    %62 = arith.mulf %53, %33 : vector<1x128xf32>
    %63 = arith.addf %61, %62 : vector<1x128xf32>
    %64 = arith.index_cast %c1_i32 : i32 to index
    %c0_15 = arith.constant 0 : index
    %65 = vector.load %arg5[%64, %c0_15] : memref<8x128xf32, #tpu.memory_space<vmem>>, vector<1x128xf32>
    tpu.vector_store %arg5[%64, %c0_15], %63 {strides = array<i32>} : memref<8x128xf32, #tpu.memory_space<vmem>>, vector<1x128xf32>,
    %c2_i32 = arith.constant 2 : i32
    %66 = arith.index_cast %c2_i32 : i32 to index
    %c0_16 = arith.constant 0 : index
    %67 = vector.load %arg1[%66, %c0_16] : memref<8x128xf32, #tpu.memory_space<vmem>>, vector<1x128xf32>
    %68 = arith.select %4, %63, %67 : vector<1x128xi1>, vector<1x128xf32>
    %69 = arith.truncf %68 : vector<1x128xf32> to vector<1x128xbf16>
    %cst_17 = arith.constant dense<0.000000e+00> : vector<1x512xf32>
    %70 = tpu.matmul %69, %0, %cst_17 {dimension_numbers = #tpu.dot_dimension_numbers<[1], [0], [0], [1], [0, 0, 1, 1], [], []>} : vector<1x128xbf16>, vector<128x512xbf16>, vector<1x512xf32> -> vector<1x512xf32>
    %71 = arith.addf %70, %1 : vector<1x512xf32>
    %72 = vector.extract_strided_slice %71 {offsets = [0, 0], sizes = [1, 128], strides = [1, 1]} : vector<1x512xf32> to vector<1x128xf32>
    %73 = arith.negf %72 : vector<1x128xf32>
    %74 = math.exp %73 : vector<1x128xf32>
    %cst_18 = arith.constant 1.000000e+00 : f32
    %75 = vector.broadcast %cst_18 : f32 to vector<1x128xf32>
    %76 = arith.addf %75, %74 : vector<1x128xf32>
    %77 = arith.divf %75, %76 : vector<1x128xf32>
    %78 = vector.extract_strided_slice %71 {offsets = [0, 128], sizes = [1, 128], strides = [1, 1]} : vector<1x512xf32> to vector<1x128xf32>
    %79 = arith.negf %78 : vector<1x128xf32>
    %80 = math.exp %79 : vector<1x128xf32>
    %cst_19 = arith.constant 1.000000e+00 : f32
    %81 = vector.broadcast %cst_19 : f32 to vector<1x128xf32>
    %82 = arith.addf %81, %80 : vector<1x128xf32>
    %83 = arith.divf %81, %82 : vector<1x128xf32>
    %84 = vector.extract_strided_slice %71 {offsets = [0, 256], sizes = [1, 128], strides = [1, 1]} : vector<1x512xf32> to vector<1x128xf32>
    %85 = vector.extract_strided_slice %71 {offsets = [0, 384], sizes = [1, 128], strides = [1, 1]} : vector<1x512xf32> to vector<1x128xf32>
    %86 = arith.mulf %77, %85 : vector<1x128xf32>
    %87 = arith.addf %84, %86 : vector<1x128xf32>
    %88 = math.tanh %87 : vector<1x128xf32>
    %cst_20 = arith.constant 1.000000e+00 : f32
    %89 = vector.broadcast %cst_20 : f32 to vector<1x128xf32>
    %90 = arith.subf %89, %83 : vector<1x128xf32>
    %91 = arith.mulf %90, %88 : vector<1x128xf32>
    %92 = arith.mulf %83, %63 : vector<1x128xf32>
    %93 = arith.addf %91, %92 : vector<1x128xf32>
    %94 = arith.index_cast %c2_i32 : i32 to index
    %c0_21 = arith.constant 0 : index
    %95 = vector.load %arg5[%94, %c0_21] : memref<8x128xf32, #tpu.memory_space<vmem>>, vector<1x128xf32>
    tpu.vector_store %arg5[%94, %c0_21], %93 {strides = array<i32>} : memref<8x128xf32, #tpu.memory_space<vmem>>, vector<1x128xf32>,
    %c3_i32 = arith.constant 3 : i32
    %96 = arith.index_cast %c3_i32 : i32 to index
    %c0_22 = arith.constant 0 : index
    %97 = vector.load %arg1[%96, %c0_22] : memref<8x128xf32, #tpu.memory_space<vmem>>, vector<1x128xf32>
    %98 = arith.select %4, %93, %97 : vector<1x128xi1>, vector<1x128xf32>
    %99 = arith.truncf %98 : vector<1x128xf32> to vector<1x128xbf16>
    %cst_23 = arith.constant dense<0.000000e+00> : vector<1x512xf32>
    %100 = tpu.matmul %99, %0, %cst_23 {dimension_numbers = #tpu.dot_dimension_numbers<[1], [0], [0], [1], [0, 0, 1, 1], [], []>} : vector<1x128xbf16>, vector<128x512xbf16>, vector<1x512xf32> -> vector<1x512xf32>
    %101 = arith.addf %100, %1 : vector<1x512xf32>
    %102 = vector.extract_strided_slice %101 {offsets = [0, 0], sizes = [1, 128], strides = [1, 1]} : vector<1x512xf32> to vector<1x128xf32>
    %103 = arith.negf %102 : vector<1x128xf32>
    %104 = math.exp %103 : vector<1x128xf32>
    %cst_24 = arith.constant 1.000000e+00 : f32
    %105 = vector.broadcast %cst_24 : f32 to vector<1x128xf32>
    %106 = arith.addf %105, %104 : vector<1x128xf32>
    %107 = arith.divf %105, %106 : vector<1x128xf32>
    %108 = vector.extract_strided_slice %101 {offsets = [0, 128], sizes = [1, 128], strides = [1, 1]} : vector<1x512xf32> to vector<1x128xf32>
    %109 = arith.negf %108 : vector<1x128xf32>
    %110 = math.exp %109 : vector<1x128xf32>
    %cst_25 = arith.constant 1.000000e+00 : f32
    %111 = vector.broadcast %cst_25 : f32 to vector<1x128xf32>
    %112 = arith.addf %111, %110 : vector<1x128xf32>
    %113 = arith.divf %111, %112 : vector<1x128xf32>
    %114 = vector.extract_strided_slice %101 {offsets = [0, 256], sizes = [1, 128], strides = [1, 1]} : vector<1x512xf32> to vector<1x128xf32>
    %115 = vector.extract_strided_slice %101 {offsets = [0, 384], sizes = [1, 128], strides = [1, 1]} : vector<1x512xf32> to vector<1x128xf32>
    %116 = arith.mulf %107, %115 : vector<1x128xf32>
    %117 = arith.addf %114, %116 : vector<1x128xf32>
    %118 = math.tanh %117 : vector<1x128xf32>
    %cst_26 = arith.constant 1.000000e+00 : f32
    %119 = vector.broadcast %cst_26 : f32 to vector<1x128xf32>
    %120 = arith.subf %119, %113 : vector<1x128xf32>
    %121 = arith.mulf %120, %118 : vector<1x128xf32>
    %122 = arith.mulf %113, %93 : vector<1x128xf32>
    %123 = arith.addf %121, %122 : vector<1x128xf32>
    %124 = arith.index_cast %c3_i32 : i32 to index
    %c0_27 = arith.constant 0 : index
    %125 = vector.load %arg5[%124, %c0_27] : memref<8x128xf32, #tpu.memory_space<vmem>>, vector<1x128xf32>
    tpu.vector_store %arg5[%124, %c0_27], %123 {strides = array<i32>} : memref<8x128xf32, #tpu.memory_space<vmem>>, vector<1x128xf32>,
    %c4_i32 = arith.constant 4 : i32
    %126 = arith.index_cast %c4_i32 : i32 to index
    %c0_28 = arith.constant 0 : index
    %127 = vector.load %arg1[%126, %c0_28] : memref<8x128xf32, #tpu.memory_space<vmem>>, vector<1x128xf32>
    %128 = arith.select %4, %123, %127 : vector<1x128xi1>, vector<1x128xf32>
    %129 = arith.truncf %128 : vector<1x128xf32> to vector<1x128xbf16>
    %cst_29 = arith.constant dense<0.000000e+00> : vector<1x512xf32>
    %130 = tpu.matmul %129, %0, %cst_29 {dimension_numbers = #tpu.dot_dimension_numbers<[1], [0], [0], [1], [0, 0, 1, 1], [], []>} : vector<1x128xbf16>, vector<128x512xbf16>, vector<1x512xf32> -> vector<1x512xf32>
    %131 = arith.addf %130, %1 : vector<1x512xf32>
    %132 = vector.extract_strided_slice %131 {offsets = [0, 0], sizes = [1, 128], strides = [1, 1]} : vector<1x512xf32> to vector<1x128xf32>
    %133 = arith.negf %132 : vector<1x128xf32>
    %134 = math.exp %133 : vector<1x128xf32>
    %cst_30 = arith.constant 1.000000e+00 : f32
    %135 = vector.broadcast %cst_30 : f32 to vector<1x128xf32>
    %136 = arith.addf %135, %134 : vector<1x128xf32>
    %137 = arith.divf %135, %136 : vector<1x128xf32>
    %138 = vector.extract_strided_slice %131 {offsets = [0, 128], sizes = [1, 128], strides = [1, 1]} : vector<1x512xf32> to vector<1x128xf32>
    %139 = arith.negf %138 : vector<1x128xf32>
    %140 = math.exp %139 : vector<1x128xf32>
    %cst_31 = arith.constant 1.000000e+00 : f32
    %141 = vector.broadcast %cst_31 : f32 to vector<1x128xf32>
    %142 = arith.addf %141, %140 : vector<1x128xf32>
    %143 = arith.divf %141, %142 : vector<1x128xf32>
    %144 = vector.extract_strided_slice %131 {offsets = [0, 256], sizes = [1, 128], strides = [1, 1]} : vector<1x512xf32> to vector<1x128xf32>
    %145 = vector.extract_strided_slice %131 {offsets = [0, 384], sizes = [1, 128], strides = [1, 1]} : vector<1x512xf32> to vector<1x128xf32>
    %146 = arith.mulf %137, %145 : vector<1x128xf32>
    %147 = arith.addf %144, %146 : vector<1x128xf32>
    %148 = math.tanh %147 : vector<1x128xf32>
    %cst_32 = arith.constant 1.000000e+00 : f32
    %149 = vector.broadcast %cst_32 : f32 to vector<1x128xf32>
    %150 = arith.subf %149, %143 : vector<1x128xf32>
    %151 = arith.mulf %150, %148 : vector<1x128xf32>
    %152 = arith.mulf %143, %123 : vector<1x128xf32>
    %153 = arith.addf %151, %152 : vector<1x128xf32>
    %154 = arith.index_cast %c4_i32 : i32 to index
    %c0_33 = arith.constant 0 : index
    %155 = vector.load %arg5[%154, %c0_33] : memref<8x128xf32, #tpu.memory_space<vmem>>, vector<1x128xf32>
    tpu.vector_store %arg5[%154, %c0_33], %153 {strides = array<i32>} : memref<8x128xf32, #tpu.memory_space<vmem>>, vector<1x128xf32>,
    %c5_i32 = arith.constant 5 : i32
    %156 = arith.index_cast %c5_i32 : i32 to index
    %c0_34 = arith.constant 0 : index
    %157 = vector.load %arg1[%156, %c0_34] : memref<8x128xf32, #tpu.memory_space<vmem>>, vector<1x128xf32>
    %158 = arith.select %4, %153, %157 : vector<1x128xi1>, vector<1x128xf32>
    %159 = arith.truncf %158 : vector<1x128xf32> to vector<1x128xbf16>
    %cst_35 = arith.constant dense<0.000000e+00> : vector<1x512xf32>
    %160 = tpu.matmul %159, %0, %cst_35 {dimension_numbers = #tpu.dot_dimension_numbers<[1], [0], [0], [1], [0, 0, 1, 1], [], []>} : vector<1x128xbf16>, vector<128x512xbf16>, vector<1x512xf32> -> vector<1x512xf32>
    %161 = arith.addf %160, %1 : vector<1x512xf32>
    %162 = vector.extract_strided_slice %161 {offsets = [0, 0], sizes = [1, 128], strides = [1, 1]} : vector<1x512xf32> to vector<1x128xf32>
    %163 = arith.negf %162 : vector<1x128xf32>
    %164 = math.exp %163 : vector<1x128xf32>
    %cst_36 = arith.constant 1.000000e+00 : f32
    %165 = vector.broadcast %cst_36 : f32 to vector<1x128xf32>
    %166 = arith.addf %165, %164 : vector<1x128xf32>
    %167 = arith.divf %165, %166 : vector<1x128xf32>
    %168 = vector.extract_strided_slice %161 {offsets = [0, 128], sizes = [1, 128], strides = [1, 1]} : vector<1x512xf32> to vector<1x128xf32>
    %169 = arith.negf %168 : vector<1x128xf32>
    %170 = math.exp %169 : vector<1x128xf32>
    %cst_37 = arith.constant 1.000000e+00 : f32
    %171 = vector.broadcast %cst_37 : f32 to vector<1x128xf32>
    %172 = arith.addf %171, %170 : vector<1x128xf32>
    %173 = arith.divf %171, %172 : vector<1x128xf32>
    %174 = vector.extract_strided_slice %161 {offsets = [0, 256], sizes = [1, 128], strides = [1, 1]} : vector<1x512xf32> to vector<1x128xf32>
    %175 = vector.extract_strided_slice %161 {offsets = [0, 384], sizes = [1, 128], strides = [1, 1]} : vector<1x512xf32> to vector<1x128xf32>
    %176 = arith.mulf %167, %175 : vector<1x128xf32>
    %177 = arith.addf %174, %176 : vector<1x128xf32>
    %178 = math.tanh %177 : vector<1x128xf32>
    %cst_38 = arith.constant 1.000000e+00 : f32
    %179 = vector.broadcast %cst_38 : f32 to vector<1x128xf32>
    %180 = arith.subf %179, %173 : vector<1x128xf32>
    %181 = arith.mulf %180, %178 : vector<1x128xf32>
    %182 = arith.mulf %173, %153 : vector<1x128xf32>
    %183 = arith.addf %181, %182 : vector<1x128xf32>
    %184 = arith.index_cast %c5_i32 : i32 to index
    %c0_39 = arith.constant 0 : index
    %185 = vector.load %arg5[%184, %c0_39] : memref<8x128xf32, #tpu.memory_space<vmem>>, vector<1x128xf32>
    tpu.vector_store %arg5[%184, %c0_39], %183 {strides = array<i32>} : memref<8x128xf32, #tpu.memory_space<vmem>>, vector<1x128xf32>,
    %c6_i32 = arith.constant 6 : i32
    %186 = arith.index_cast %c6_i32 : i32 to index
    %c0_40 = arith.constant 0 : index
    %187 = vector.load %arg1[%186, %c0_40] : memref<8x128xf32, #tpu.memory_space<vmem>>, vector<1x128xf32>
    %188 = arith.select %4, %183, %187 : vector<1x128xi1>, vector<1x128xf32>
    %189 = arith.truncf %188 : vector<1x128xf32> to vector<1x128xbf16>
    %cst_41 = arith.constant dense<0.000000e+00> : vector<1x512xf32>
    %190 = tpu.matmul %189, %0, %cst_41 {dimension_numbers = #tpu.dot_dimension_numbers<[1], [0], [0], [1], [0, 0, 1, 1], [], []>} : vector<1x128xbf16>, vector<128x512xbf16>, vector<1x512xf32> -> vector<1x512xf32>
    %191 = arith.addf %190, %1 : vector<1x512xf32>
    %192 = vector.extract_strided_slice %191 {offsets = [0, 0], sizes = [1, 128], strides = [1, 1]} : vector<1x512xf32> to vector<1x128xf32>
    %193 = arith.negf %192 : vector<1x128xf32>
    %194 = math.exp %193 : vector<1x128xf32>
    %cst_42 = arith.constant 1.000000e+00 : f32
    %195 = vector.broadcast %cst_42 : f32 to vector<1x128xf32>
    %196 = arith.addf %195, %194 : vector<1x128xf32>
    %197 = arith.divf %195, %196 : vector<1x128xf32>
    %198 = vector.extract_strided_slice %191 {offsets = [0, 128], sizes = [1, 128], strides = [1, 1]} : vector<1x512xf32> to vector<1x128xf32>
    %199 = arith.negf %198 : vector<1x128xf32>
    %200 = math.exp %199 : vector<1x128xf32>
    %cst_43 = arith.constant 1.000000e+00 : f32
    %201 = vector.broadcast %cst_43 : f32 to vector<1x128xf32>
    %202 = arith.addf %201, %200 : vector<1x128xf32>
    %203 = arith.divf %201, %202 : vector<1x128xf32>
    %204 = vector.extract_strided_slice %191 {offsets = [0, 256], sizes = [1, 128], strides = [1, 1]} : vector<1x512xf32> to vector<1x128xf32>
    %205 = vector.extract_strided_slice %191 {offsets = [0, 384], sizes = [1, 128], strides = [1, 1]} : vector<1x512xf32> to vector<1x128xf32>
    %206 = arith.mulf %197, %205 : vector<1x128xf32>
    %207 = arith.addf %204, %206 : vector<1x128xf32>
    %208 = math.tanh %207 : vector<1x128xf32>
    %cst_44 = arith.constant 1.000000e+00 : f32
    %209 = vector.broadcast %cst_44 : f32 to vector<1x128xf32>
    %210 = arith.subf %209, %203 : vector<1x128xf32>
    %211 = arith.mulf %210, %208 : vector<1x128xf32>
    %212 = arith.mulf %203, %183 : vector<1x128xf32>
    %213 = arith.addf %211, %212 : vector<1x128xf32>
    %214 = arith.index_cast %c6_i32 : i32 to index
    %c0_45 = arith.constant 0 : index
    %215 = vector.load %arg5[%214, %c0_45] : memref<8x128xf32, #tpu.memory_space<vmem>>, vector<1x128xf32>
    tpu.vector_store %arg5[%214, %c0_45], %213 {strides = array<i32>} : memref<8x128xf32, #tpu.memory_space<vmem>>, vector<1x128xf32>,
    %c7_i32 = arith.constant 7 : i32
    %216 = arith.index_cast %c7_i32 : i32 to index
    %c0_46 = arith.constant 0 : index
    %217 = vector.load %arg1[%216, %c0_46] : memref<8x128xf32, #tpu.memory_space<vmem>>, vector<1x128xf32>
    %218 = arith.select %4, %213, %217 : vector<1x128xi1>, vector<1x128xf32>
    %219 = arith.truncf %218 : vector<1x128xf32> to vector<1x128xbf16>
    %cst_47 = arith.constant dense<0.000000e+00> : vector<1x512xf32>
    %220 = tpu.matmul %219, %0, %cst_47 {dimension_numbers = #tpu.dot_dimension_numbers<[1], [0], [0], [1], [0, 0, 1, 1], [], []>} : vector<1x128xbf16>, vector<128x512xbf16>, vector<1x512xf32> -> vector<1x512xf32>
    %221 = arith.addf %220, %1 : vector<1x512xf32>
    %222 = vector.extract_strided_slice %221 {offsets = [0, 0], sizes = [1, 128], strides = [1, 1]} : vector<1x512xf32> to vector<1x128xf32>
    %223 = arith.negf %222 : vector<1x128xf32>
    %224 = math.exp %223 : vector<1x128xf32>
    %cst_48 = arith.constant 1.000000e+00 : f32
    %225 = vector.broadcast %cst_48 : f32 to vector<1x128xf32>
    %226 = arith.addf %225, %224 : vector<1x128xf32>
    %227 = arith.divf %225, %226 : vector<1x128xf32>
    %228 = vector.extract_strided_slice %221 {offsets = [0, 128], sizes = [1, 128], strides = [1, 1]} : vector<1x512xf32> to vector<1x128xf32>
    %229 = arith.negf %228 : vector<1x128xf32>
    %230 = math.exp %229 : vector<1x128xf32>
    %cst_49 = arith.constant 1.000000e+00 : f32
    %231 = vector.broadcast %cst_49 : f32 to vector<1x128xf32>
    %232 = arith.addf %231, %230 : vector<1x128xf32>
    %233 = arith.divf %231, %232 : vector<1x128xf32>
    %234 = vector.extract_strided_slice %221 {offsets = [0, 256], sizes = [1, 128], strides = [1, 1]} : vector<1x512xf32> to vector<1x128xf32>
    %235 = vector.extract_strided_slice %221 {offsets = [0, 384], sizes = [1, 128], strides = [1, 1]} : vector<1x512xf32> to vector<1x128xf32>
    %236 = arith.mulf %227, %235 : vector<1x128xf32>
    %237 = arith.addf %234, %236 : vector<1x128xf32>
    %238 = math.tanh %237 : vector<1x128xf32>
    %cst_50 = arith.constant 1.000000e+00 : f32
    %239 = vector.broadcast %cst_50 : f32 to vector<1x128xf32>
    %240 = arith.subf %239, %233 : vector<1x128xf32>
    %241 = arith.mulf %240, %238 : vector<1x128xf32>
    %242 = arith.mulf %233, %213 : vector<1x128xf32>
    %243 = arith.addf %241, %242 : vector<1x128xf32>
    %244 = arith.index_cast %c7_i32 : i32 to index
    %c0_51 = arith.constant 0 : index
    %245 = vector.load %arg5[%244, %c0_51] : memref<8x128xf32, #tpu.memory_space<vmem>>, vector<1x128xf32>
    tpu.vector_store %arg5[%244, %c0_51], %243 {strides = array<i32>} : memref<8x128xf32, #tpu.memory_space<vmem>>, vector<1x128xf32>,
    %c8_i32 = arith.constant 8 : i32
    return
  }
  func.func @transform_0(%arg0: i32) -> (i32, i32) {
    %c0_i32 = arith.constant 0 : i32
    %c0_i32_0 = arith.constant 0 : i32
    %c0_i32_1 = arith.constant 0 : i32
    return %c0_i32, %c0_i32_0 : i32, i32
  }
  func.func @transform_1(%arg0: i32) -> (i32, i32) {
    %c0_i32 = arith.constant 0 : i32
    %c0_i32_0 = arith.constant 0 : i32
    %c0_i32_1 = arith.constant 0 : i32
    return %c0_i32, %c0_i32_0 : i32, i32
  }
  func.func @transform_2(%arg0: i32) -> (i32, i32) {
    %c0_i32 = arith.constant 0 : i32
    %c0_i32_0 = arith.constant 0 : i32
    %c0_i32_1 = arith.constant 0 : i32
    return %c0_i32, %c0_i32_0 : i32, i32
  }
  func.func @transform_3(%arg0: i32) -> (i32, i32) {
    %c0_i32 = arith.constant 0 : i32
    %c0_i32_0 = arith.constant 0 : i32
    %c0_i32_1 = arith.constant 0 : i32
    return %c0_i32, %c0_i32_0 : i32, i32
  }
  func.func @transform_4(%arg0: i32) -> (i32, i32) {
    %c0_i32 = arith.constant 0 : i32
    %c0_i32_0 = arith.constant 0 : i32
    %c0_i32_1 = arith.constant 0 : i32
    return %c0_i32, %c0_i32_0 : i32, i32
  }
}

</mosaic_0001>

<llo_original>
// kernel: tpu_custom_call.1
$region0: #{tpu_custom_call.1}
  #allocation0 [shape = 'u32[]', space=smem, size = 0x4, offset = 0x4, fixed_abs, tag = 'smem constant byte address 0x4 - core index']
  #allocation1 [shape = 'u32[144,128]{1,0:T(1,128)}', space=vmem, size = 0x12000, scoped, tag = 'internal scratch']
  %s0 = inlined_call_operand.hbm [shape: f32[8,128], index: 0, kind: input, shape index: {}]
  %s1 = inlined_call_operand.vmem [shape: f32[1,128], index: 1, kind: input, shape index: {}]
  %s2 = inlined_call_operand.hbm [shape: bf16[128,512], index: 2, kind: input, shape index: {}]
  %s3 = inlined_call_operand.vmem [shape: f32[1,512], index: 3, kind: input, shape index: {}]
  %s4 = inlined_call_operand.hbm [shape: f32[8,128], index: 4, kind: output, shape index: {}]
  %s5 = sld [smem:[#allocation0]]
  $region34: #{tpu_custom_call.1} parent=0
    _
  %s7 = ssub.s32 1, %s5
  %s8 = scalar_select 0, %s7, %s5
  $region1: #{tpu_custom_call.1} parent=0
    #allocation2 [shape = 'u8[4096]{0}', space=vmem, size = 0x1000, scoped, tag = 'input window, operand 0, single buffered']
    #allocation3 [shape = 's32[1]{0}', space=sflag, size = 0x4, scoped, tag = 'scoped memory for tpu_custom_call.1']
    #allocation4 [shape = 's32[1]{0}', space=sflag, size = 0x4, scoped, tag = 'scoped memory for tpu_custom_call.1']
    #allocation5 [shape = 'u8[131072]{0}', space=vmem, size = 0x20000, scoped, tag = 'input window, operand 2, single buffered']
    #allocation6 [shape = 's32[1]{0}', space=sflag, size = 0x4, scoped, tag = 'scoped memory for tpu_custom_call.1']
    #allocation7 [shape = 'u8[4096]{0}', space=vmem, size = 0x1000, scoped, tag = 'output window, operand 0, single buffered']
    %9 = vsyncpa [#allocation3], 0
    %10 = vsyncpa [#allocation6], 0
    %11 = vsyncpa [#allocation4], 0
    // Predicated region
    $region2: #{tpu_custom_call.1} parent=1 // pred_check
      _
    $region3: #{tpu_custom_call.1} parent=1 // pred_check_branch
      %13 = sbr.rel (0) target = $region5
    $region4: #{tpu_custom_call.1} parent=1 // pred_region
      %s15 = ssub.s32 128, 128
      %16 = vsyncadd [#allocation3], %s15
      %s18 = sshll.u32 [#allocation2], 4
      %s19 = int_to_ptr.vmem [resolvable:$true] %s18
      %21 = dma.hbm_to_vmem [thread:$0]  %s0, 128, %s19, [#allocation3]
    $region5: #{tpu_custom_call.1} parent=1 // pred_fallthru
      _
    // Predicated region
    $region6: #{tpu_custom_call.1} parent=1 // pred_check
      _
    $region7: #{tpu_custom_call.1} parent=1 // pred_check_branch
      %23 = sbr.rel (0) target = $region9
    $region8: #{tpu_custom_call.1} parent=1 // pred_region
      _
    $region9: #{tpu_custom_call.1} parent=1 // pred_fallthru
      _
    // Predicated region
    $region10: #{tpu_custom_call.1} parent=1 // pred_check
      _
    $region11: #{tpu_custom_call.1} parent=1 // pred_check_branch
      %25 = sbr.rel (0) target = $region13
    $region12: #{tpu_custom_call.1} parent=1 // pred_region
      %s27 = ssub.s32 4096, 4096
      %28 = vsyncadd [#allocation6], %s27
      %s29 = sshll.u32 [#allocation5], 4
      %s30 = int_to_ptr.vmem [resolvable:$true] %s29
      %35 = dma.hbm_to_vmem [thread:$0]  %s2, 4096, %s30, [#allocation6], 256, 256, 16
    $region13: #{tpu_custom_call.1} parent=1 // pred_fallthru
      _
    // Predicated region
    $region14: #{tpu_custom_call.1} parent=1 // pred_check
      _
    $region15: #{tpu_custom_call.1} parent=1 // pred_check_branch
      %37 = sbr.rel (0) target = $region17
    $region16: #{tpu_custom_call.1} parent=1 // pred_region
      _
    $region17: #{tpu_custom_call.1} parent=1 // pred_fallthru
      _
    // Predicated region
    $region18: #{tpu_custom_call.1} parent=1 // pred_check
      _
    $region19: #{tpu_custom_call.1} parent=1 // pred_check_branch
      %39 = sbr.rel (0) target = $region21
    $region20: #{tpu_custom_call.1} parent=1 // pred_region
      %40 = dma.done [#allocation3], 128
    $region21: #{tpu_custom_call.1} parent=1 // pred_fallthru
      _
    // Predicated region
    $region22: #{tpu_custom_call.1} parent=1 // pred_check
      _
    $region23: #{tpu_custom_call.1} parent=1 // pred_check_branch
      %42 = sbr.rel (0) target = $region25
    $region24: #{tpu_custom_call.1} parent=1 // pred_region
      %43 = dma.done [#allocation6], 4096
    $region25: #{tpu_custom_call.1} parent=1 // pred_fallthru
      _
    %v45 = vld [vmem:[#allocation5] sm:$0xff]
    %v46 = vld [vmem:[#allocation5 + $0x8] sm:$0xff]
    %v47 = vld [vmem:[#allocation5 + $0x10] sm:$0xff]
    %v48 = vld [vmem:[#allocation5 + $0x18] sm:$0xff]
    %v49 = vld [vmem:[#allocation5 + $0x20] sm:$0xff]
    %v50 = vld [vmem:[#allocation5 + $0x28] sm:$0xff]
    %v51 = vld [vmem:[#allocation5 + $0x30] sm:$0xff]
    %v52 = vld [vmem:[#allocation5 + $0x38] sm:$0xff]
    %v53 = vld [vmem:[#allocation5 + $0x40] sm:$0xff]
    %v54 = vld [vmem:[#allocation5 + $0x48] sm:$0xff]
    %v55 = vld [vmem:[#allocation5 + $0x50] sm:$0xff]
    %v56 = vld [vmem:[#allocation5 + $0x58] sm:$0xff]
    %v57 = vld [vmem:[#allocation5 + $0x60] sm:$0xff]
    %v58 = vld [vmem:[#allocation5 + $0x68] sm:$0xff]
    %v59 = vld [vmem:[#allocation5 + $0x70] sm:$0xff]
    %v60 = vld [vmem:[#allocation5 + $0x78] sm:$0xff]
    %v61 = vld [vmem:[#allocation5 + $0x80] sm:$0xff]
    %v62 = vld [vmem:[#allocation5 + $0x88] sm:$0xff]
    %v63 = vld [vmem:[#allocation5 + $0x90] sm:$0xff]
    %v64 = vld [vmem:[#allocation5 + $0x98] sm:$0xff]
    %v65 = vld [vmem:[#allocation5 + $0xa0] sm:$0xff]
    %v66 = vld [vmem:[#allocation5 + $0xa8] sm:$0xff]
    %v67 = vld [vmem:[#allocation5 + $0xb0] sm:$0xff]
    %v68 = vld [vmem:[#allocation5 + $0xb8] sm:$0xff]
    %v69 = vld [vmem:[#allocation5 + $0xc0] sm:$0xff]
    %v70 = vld [vmem:[#allocation5 + $0xc8] sm:$0xff]
    %v71 = vld [vmem:[#allocation5 + $0xd0] sm:$0xff]
    %v72 = vld [vmem:[#allocation5 + $0xd8] sm:$0xff]
    %v73 = vld [vmem:[#allocation5 + $0xe0] sm:$0xff]
    %v74 = vld [vmem:[#allocation5 + $0xe8] sm:$0xff]
    %v75 = vld [vmem:[#allocation5 + $0xf0] sm:$0xff]
    %v76 = vld [vmem:[#allocation5 + $0xf8] sm:$0xff]
    %v77 = vld [vmem:[%s3] sm:$0xf]
    %v78 = vlaneseq
    %v79 = vand.u32 %v78, 127
    %vm80 = vcmp.lt.s32.totalorder %v79, 32
    %v81 = vld [vmem:[%s1] sm:$0x1]
    %v82 = vld [vmem:[#allocation2] sm:$0x1]
    %v83 = vsel %vm80, %v81, %v82
    %v84 = vpack.c.bf16 %v83, %v83
    %v117 = vunpack.c.l.b16 %v45
    %v118 = vunpack.c.h.b16 %v45
    %v119 = vunpack.c.l.b16 %v46
    %v120 = vunpack.c.h.b16 %v46
    %v121 = vunpack.c.l.b16 %v47
    %v122 = vunpack.c.h.b16 %v47
    %v123 = vunpack.c.l.b16 %v48
    %v124 = vunpack.c.h.b16 %v48
    %v125 = vunpack.c.l.b16 %v49
    %v126 = vunpack.c.h.b16 %v49
    %v127 = vunpack.c.l.b16 %v50
    %v128 = vunpack.c.h.b16 %v50
    %v129 = vunpack.c.l.b16 %v51
    %v130 = vunpack.c.h.b16 %v51
    %v131 = vunpack.c.l.b16 %v52
    %v132 = vunpack.c.h.b16 %v52
    %v133 = vunpack.c.l.b16 %v53
    %v134 = vunpack.c.h.b16 %v53
    %v135 = vunpack.c.l.b16 %v54
    %v136 = vunpack.c.h.b16 %v54
    %v137 = vunpack.c.l.b16 %v55
    %v138 = vunpack.c.h.b16 %v55
    %v139 = vunpack.c.l.b16 %v56
    %v140 = vunpack.c.h.b16 %v56
    %v141 = vunpack.c.l.b16 %v57
    %v142 = vunpack.c.h.b16 %v57
    %v143 = vunpack.c.l.b16 %v58
    %v144 = vunpack.c.h.b16 %v58
    %v145 = vunpack.c.l.b16 %v59
    %v146 = vunpack.c.h.b16 %v59
    %v147 = vunpack.c.l.b16 %v60
    %v148 = vunpack.c.h.b16 %v60
    %v149 = vunpack.c.l.b16 %v61
    %v150 = vunpack.c.h.b16 %v61
    %v151 = vunpack.c.l.b16 %v62
    %v152 = vunpack.c.h.b16 %v62
    %v153 = vunpack.c.l.b16 %v63
    %v154 = vunpack.c.h.b16 %v63
    %v155 = vunpack.c.l.b16 %v64
    %v156 = vunpack.c.h.b16 %v64
    %v157 = vunpack.c.l.b16 %v65
    %v158 = vunpack.c.h.b16 %v65
    %v159 = vunpack.c.l.b16 %v66
    %v160 = vunpack.c.h.b16 %v66
    %v161 = vunpack.c.l.b16 %v67
    %v162 = vunpack.c.h.b16 %v67
    %v163 = vunpack.c.l.b16 %v68
    %v164 = vunpack.c.h.b16 %v68
    %v165 = vunpack.c.l.b16 %v69
    %v166 = vunpack.c.h.b16 %v69
    %v167 = vunpack.c.l.b16 %v70
    %v168 = vunpack.c.h.b16 %v70
    %v169 = vunpack.c.l.b16 %v71
    %v170 = vunpack.c.h.b16 %v71
    %v171 = vunpack.c.l.b16 %v72
    %v172 = vunpack.c.h.b16 %v72
    %v173 = vunpack.c.l.b16 %v73
    %v174 = vunpack.c.h.b16 %v73
    %v175 = vunpack.c.l.b16 %v74
    %v176 = vunpack.c.h.b16 %v74
    %v177 = vunpack.c.l.b16 %v75
    %v178 = vunpack.c.h.b16 %v75
    %v179 = vunpack.c.l.b16 %v76
    %v180 = vunpack.c.h.b16 %v76
    %v181 = vpack.c.b16 %v121, %v117
    %v182 = vpack.c.b16 %v122, %v118
    %v183 = vpack.c.b16 %v123, %v119
    %v184 = vpack.c.b16 %v124, %v120
    %v185 = vpack.c.b16 %v129, %v125
    %v186 = vpack.c.b16 %v130, %v126
    %v187 = vpack.c.b16 %v131, %v127
    %v188 = vpack.c.b16 %v132, %v128
    %v189 = vpack.c.b16 %v137, %v133
    %v190 = vpack.c.b16 %v138, %v134
    %v191 = vpack.c.b16 %v139, %v135
    %v192 = vpack.c.b16 %v140, %v136
    %v193 = vpack.c.b16 %v145, %v141
    %v194 = vpack.c.b16 %v146, %v142
    %v195 = vpack.c.b16 %v147, %v143
    %v196 = vpack.c.b16 %v148, %v144
    %v197 = vpack.c.b16 %v153, %v149
    %v198 = vpack.c.b16 %v154, %v150
    %v199 = vpack.c.b16 %v155, %v151
    %v200 = vpack.c.b16 %v156, %v152
    %v201 = vpack.c.b16 %v161, %v157
    %v202 = vpack.c.b16 %v162, %v158
    %v203 = vpack.c.b16 %v163, %v159
    %v204 = vpack.c.b16 %v164, %v160
    %v205 = vpack.c.b16 %v169, %v165
    %v206 = vpack.c.b16 %v170, %v166
    %v207 = vpack.c.b16 %v171, %v167
    %v208 = vpack.c.b16 %v172, %v168
    %v209 = vpack.c.b16 %v177, %v173
    %v210 = vpack.c.b16 %v178, %v174
    %v211 = vpack.c.b16 %v179, %v175
    %v212 = vpack.c.b16 %v180, %v176
    %v246 = vlaneseq
    %v247 = vshrl.u32 %v246, 7
    %v248 = vsub.s32 0, %v247
    %v249 = vrot.slane %v77, %v248
    %v250 = vlaneseq
    %v251 = vshrl.u32 %v250, 7
    %v252 = vsub.s32 1, %v251
    %v253 = vrot.slane %v77, %v252
    %v254 = vlaneseq
    %v255 = vshrl.u32 %v254, 7
    %v256 = vsub.s32 2, %v255
    %v257 = vrot.slane %v77, %v256
    %v258 = vlaneseq
    %v259 = vshrl.u32 %v258, 7
    %v260 = vsub.s32 3, %v259
    %v261 = vrot.slane %v77, %v260
    %266 = vmatprep.subr.bf16.mxu0 %v182
    %267 = vmatpush1.bf16.msra.mxu0 %v181
    %268 = vmatprep.subr.bf16.mxu0 %v186
    %269 = vmatpush1.bf16.msra.mxu0 %v185
    %270 = vmatprep.subr.bf16.mxu0 %v190
    %271 = vmatpush1.bf16.msra.mxu0 %v189
    %272 = vmatprep.subr.bf16.mxu0 %v194
    %273 = vmatpush1.bf16.msra.mxu0 %v193
    %274 = vmatprep.subr.bf16.mxu0 %v198
    %275 = vmatpush1.bf16.msra.mxu0 %v197
    %276 = vmatprep.subr.bf16.mxu0 %v202
    %277 = vmatpush1.bf16.msra.mxu0 %v201
    %278 = vmatprep.subr.bf16.mxu0 %v206
    %279 = vmatpush1.bf16.msra.mxu0 %v205
    %280 = vmatprep.subr.bf16.mxu0 %v210
    %281 = vmatpush1.bf16.msra.mxu0 %v209
    %282 = vmatprep.subr.bf16.mxu0 0
    %283 = vmatpush1.bf16.msra.mxu0 0
    %284 = vmatprep.subr.bf16.mxu0 0
    %285 = vmatpush1.bf16.msra.mxu0 0
    %286 = vmatprep.subr.bf16.mxu0 0
    %287 = vmatpush1.bf16.msra.mxu0 0
    %288 = vmatprep.subr.bf16.mxu0 0
    %289 = vmatpush1.bf16.msra.mxu0 0
    %290 = vmatprep.subr.bf16.mxu0 0
    %291 = vmatpush1.bf16.msra.mxu0 0
    %292 = vmatprep.subr.bf16.mxu0 0
    %293 = vmatpush1.bf16.msra.mxu0 0
    %294 = vmatprep.subr.bf16.mxu0 0
    %295 = vmatpush1.bf16.msra.mxu0 0
    %296 = vmatprep.subr.bf16.mxu0 0
    %297 = vmatpush1.bf16.msra.mxu0 0
    %298 = vmatprep.mubr.bf16.mxu0 0
    %299 = vmatmul.mubr.bf16.gmra.mrb[0].mxu0 %v84
    %v300 = vpop.f32.mrb[0].mxu0
    %v301 = vadd.f32 %v249, %v300
    %v302 = vpop.f32.mrb[0].mxu0
    %v303 = vadd.f32 %v253, %v302
    %v304 = vpop.f32.mrb[0].mxu0
    %v305 = vpop.f32.mrb[0].mxu0
    %306 = vdwg.mxu0
    %307 = vmatprep.subr.bf16.mxu0 %v184
    %308 = vmatpush1.bf16.msra.mxu0 %v183
    %309 = vmatprep.subr.bf16.mxu0 %v188
    %310 = vmatpush1.bf16.msra.mxu0 %v187
    %311 = vmatprep.subr.bf16.mxu0 %v192
    %312 = vmatpush1.bf16.msra.mxu0 %v191
    %313 = vmatprep.subr.bf16.mxu0 %v196
    %314 = vmatpush1.bf16.msra.mxu0 %v195
    %315 = vmatprep.subr.bf16.mxu0 %v200
    %316 = vmatpush1.bf16.msra.mxu0 %v199
    %317 = vmatprep.subr.bf16.mxu0 %v204
    %318 = vmatpush1.bf16.msra.mxu0 %v203
    %319 = vmatprep.subr.bf16.mxu0 %v208
    %320 = vmatpush1.bf16.msra.mxu0 %v207
    %321 = vmatprep.subr.bf16.mxu0 %v212
    %322 = vmatpush1.bf16.msra.mxu0 %v211
    %323 = vmatprep.subr.bf16.mxu0 0
    %324 = vmatpush1.bf16.msra.mxu0 0
    %325 = vmatprep.subr.bf16.mxu0 0
    %326 = vmatpush1.bf16.msra.mxu0 0
    %327 = vmatprep.subr.bf16.mxu0 0
    %328 = vmatpush1.bf16.msra.mxu0 0
    %329 = vmatprep.subr.bf16.mxu0 0
    %330 = vmatpush1.bf16.msra.mxu0 0
    %331 = vmatprep.subr.bf16.mxu0 0
    %332 = vmatpush1.bf16.msra.mxu0 0
    %333 = vmatprep.subr.bf16.mxu0 0
    %334 = vmatpush1.bf16.msra.mxu0 0
    %335 = vmatprep.subr.bf16.mxu0 0
    %336 = vmatpush1.bf16.msra.mxu0 0
    %337 = vmatprep.subr.bf16.mxu0 0
    %338 = vmatpush1.bf16.msra.mxu0 0
    %339 = vmatprep.mubr.bf16.mxu0 0
    %340 = vmatmul.mubr.bf16.gmra.mrb[0].mxu0 %v84
    %v341 = vpop.f32.mrb[0].mxu0
    %v342 = vadd.f32 %v257, %v341
    %v343 = vpop.f32.mrb[0].mxu0
    %v344 = vadd.f32 %v261, %v343
    %v345 = vpop.f32.mrb[0].mxu0
    %v346 = vpop.f32.mrb[0].mxu0
    %347 = vdwg.mxu0
    %v348 = vxor.u32 %v301, 2147483648
    %v349 = vmul.f32 %v348, 1.442695
    %v350 = vpow.pop %v349
    %v351 = vadd.f32 %v350, 1.0
    %v352 = vrcp.pop %v351
    %v353 = vmul.f32 1.0, %v352
    %v354 = vxor.u32 %v303, 2147483648
    %v355 = vmul.f32 %v354, 1.442695
    %v356 = vpow.pop %v355
    %v357 = vadd.f32 %v356, 1.0
    %v358 = vrcp.pop %v357
    %v359 = vmul.f32 1.0, %v358
    %v360 = vmul.f32 %v353, %v344
    %v361 = vadd.f32 %v342, %v360
    %v362 = vtanh.pop %v361
    %v363 = vsub.f32 1.0, %v359
    %v364 = vmul.f32 %v363, %v362
    %v365 = vmul.f32 %v359, %v81
    %v366 = vadd.f32 %v364, %v365
    %367 = vst [vmem:[#allocation7] sm:$0x1] %v366
    %v368 = vld [vmem:[#allocation2 + $0x1] sm:$0x1]
    %v369 = vsel %vm80, %v366, %v368
    %v370 = vpack.c.bf16 %v369, %v369
    %371 = vmatprep.subr.bf16.mxu0 %v182
    %372 = vmatpush1.bf16.msra.mxu0 %v181
    %373 = vmatprep.subr.bf16.mxu0 %v186
    %374 = vmatpush1.bf16.msra.mxu0 %v185
    %375 = vmatprep.subr.bf16.mxu0 %v190
    %376 = vmatpush1.bf16.msra.mxu0 %v189
    %377 = vmatprep.subr.bf16.mxu0 %v194
    %378 = vmatpush1.bf16.msra.mxu0 %v193
    %379 = vmatprep.subr.bf16.mxu0 %v198
    %380 = vmatpush1.bf16.msra.mxu0 %v197
    %381 = vmatprep.subr.bf16.mxu0 %v202
    %382 = vmatpush1.bf16.msra.mxu0 %v201
    %383 = vmatprep.subr.bf16.mxu0 %v206
    %384 = vmatpush1.bf16.msra.mxu0 %v205
    %385 = vmatprep.subr.bf16.mxu0 %v210
    %386 = vmatpush1.bf16.msra.mxu0 %v209
    %387 = vmatprep.subr.bf16.mxu0 0
    %388 = vmatpush1.bf16.msra.mxu0 0
    %389 = vmatprep.subr.bf16.mxu0 0
    %390 = vmatpush1.bf16.msra.mxu0 0
    %391 = vmatprep.subr.bf16.mxu0 0
    %392 = vmatpush1.bf16.msra.mxu0 0
    %393 = vmatprep.subr.bf16.mxu0 0
    %394 = vmatpush1.bf16.msra.mxu0 0
    %395 = vmatprep.subr.bf16.mxu0 0
    %396 = vmatpush1.bf16.msra.mxu0 0
    %397 = vmatprep.subr.bf16.mxu0 0
    %398 = vmatpush1.bf16.msra.mxu0 0
    %399 = vmatprep.subr.bf16.mxu0 0
    %400 = vmatpush1.bf16.msra.mxu0 0
    %401 = vmatprep.subr.bf16.mxu0 0
    %402 = vmatpush1.bf16.msra.mxu0 0
    %403 = vmatprep.mubr.bf16.mxu0 0
    %404 = vmatmul.mubr.bf16.gmra.mrb[0].mxu0 %v370
    %v405 = vpop.f32.mrb[0].mxu0
    %v406 = vadd.f32 %v249, %v405
    %v407 = vpop.f32.mrb[0].mxu0
    %v408 = vadd.f32 %v253, %v407
    %v409 = vpop.f32.mrb[0].mxu0
    %v410 = vpop.f32.mrb[0].mxu0
    %411 = vdwg.mxu0
    %412 = vmatprep.subr.bf16.mxu0 %v184
    %413 = vmatpush1.bf16.msra.mxu0 %v183
    %414 = vmatprep.subr.bf16.mxu0 %v188
    %415 = vmatpush1.bf16.msra.mxu0 %v187
    %416 = vmatprep.subr.bf16.mxu0 %v192
    %417 = vmatpush1.bf16.msra.mxu0 %v191
    %418 = vmatprep.subr.bf16.mxu0 %v196
    %419 = vmatpush1.bf16.msra.mxu0 %v195
    %420 = vmatprep.subr.bf16.mxu0 %v200
    %421 = vmatpush1.bf16.msra.mxu0 %v199
    %422 = vmatprep.subr.bf16.mxu0 %v204
    %423 = vmatpush1.bf16.msra.mxu0 %v203
    %424 = vmatprep.subr.bf16.mxu0 %v208
    %425 = vmatpush1.bf16.msra.mxu0 %v207
    %426 = vmatprep.subr.bf16.mxu0 %v212
    %427 = vmatpush1.bf16.msra.mxu0 %v211
    %428 = vmatprep.subr.bf16.mxu0 0
    %429 = vmatpush1.bf16.msra.mxu0 0
    %430 = vmatprep.subr.bf16.mxu0 0
    %431 = vmatpush1.bf16.msra.mxu0 0
    %432 = vmatprep.subr.bf16.mxu0 0
    %433 = vmatpush1.bf16.msra.mxu0 0
    %434 = vmatprep.subr.bf16.mxu0 0
    %435 = vmatpush1.bf16.msra.mxu0 0
    %436 = vmatprep.subr.bf16.mxu0 0
    %437 = vmatpush1.bf16.msra.mxu0 0
    %438 = vmatprep.subr.bf16.mxu0 0
    %439 = vmatpush1.bf16.msra.mxu0 0
    %440 = vmatprep.subr.bf16.mxu0 0
    %441 = vmatpush1.bf16.msra.mxu0 0
    %442 = vmatprep.subr.bf16.mxu0 0
    %443 = vmatpush1.bf16.msra.mxu0 0
    %444 = vmatprep.mubr.bf16.mxu0 0
    %445 = vmatmul.mubr.bf16.gmra.mrb[0].mxu0 %v370
    %v446 = vpop.f32.mrb[0].mxu0
    %v447 = vadd.f32 %v257, %v446
    %v448 = vpop.f32.mrb[0].mxu0
    %v449 = vadd.f32 %v261, %v448
    %v450 = vpop.f32.mrb[0].mxu0
    %v451 = vpop.f32.mrb[0].mxu0
    %452 = vdwg.mxu0
    %v453 = vxor.u32 %v406, 2147483648
    %v454 = vmul.f32 %v453, 1.442695
    %v455 = vpow.pop %v454
    %v456 = vadd.f32 %v455, 1.0
    %v457 = vrcp.pop %v456
    %v458 = vmul.f32 1.0, %v457
    %v459 = vxor.u32 %v408, 2147483648
    %v460 = vmul.f32 %v459, 1.442695
    %v461 = vpow.pop %v460
    %v462 = vadd.f32 %v461, 1.0
    %v463 = vrcp.pop %v462
    %v464 = vmul.f32 1.0, %v463
    %v465 = vmul.f32 %v458, %v449
    %v466 = vadd.f32 %v447, %v465
    %v467 = vtanh.pop %v466
    %v468 = vsub.f32 1.0, %v464
    %v469 = vmul.f32 %v468, %v467
    %v470 = vmul.f32 %v464, %v366
    %v471 = vadd.f32 %v469, %v470
    %472 = vst [vmem:[#allocation7 + $0x1] sm:$0x1] %v471
    %v473 = vld [vmem:[#allocation2 + $0x2] sm:$0x1]
    %v474 = vsel %vm80, %v471, %v473
    %v475 = vpack.c.bf16 %v474, %v474
    %476 = vmatprep.subr.bf16.mxu0 %v182
    %477 = vmatpush1.bf16.msra.mxu0 %v181
    %478 = vmatprep.subr.bf16.mxu0 %v186
    %479 = vmatpush1.bf16.msra.mxu0 %v185
    %480 = vmatprep.subr.bf16.mxu0 %v190
    %481 = vmatpush1.bf16.msra.mxu0 %v189
    %482 = vmatprep.subr.bf16.mxu0 %v194
    %483 = vmatpush1.bf16.msra.mxu0 %v193
    %484 = vmatprep.subr.bf16.mxu0 %v198
    %485 = vmatpush1.bf16.msra.mxu0 %v197
    %486 = vmatprep.subr.bf16.mxu0 %v202
    %487 = vmatpush1.bf16.msra.mxu0 %v201
    %488 = vmatprep.subr.bf16.mxu0 %v206
    %489 = vmatpush1.bf16.msra.mxu0 %v205
    %490 = vmatprep.subr.bf16.mxu0 %v210
    %491 = vmatpush1.bf16.msra.mxu0 %v209
    %492 = vmatprep.subr.bf16.mxu0 0
    %493 = vmatpush1.bf16.msra.mxu0 0
    %494 = vmatprep.subr.bf16.mxu0 0
    %495 = vmatpush1.bf16.msra.mxu0 0
    %496 = vmatprep.subr.bf16.mxu0 0
    %497 = vmatpush1.bf16.msra.mxu0 0
    %498 = vmatprep.subr.bf16.mxu0 0
    %499 = vmatpush1.bf16.msra.mxu0 0
    %500 = vmatprep.subr.bf16.mxu0 0
    %501 = vmatpush1.bf16.msra.mxu0 0
    %502 = vmatprep.subr.bf16.mxu0 0
    %503 = vmatpush1.bf16.msra.mxu0 0
    %504 = vmatprep.subr.bf16.mxu0 0
    %505 = vmatpush1.bf16.msra.mxu0 0
    %506 = vmatprep.subr.bf16.mxu0 0
    %507 = vmatpush1.bf16.msra.mxu0 0
    %508 = vmatprep.mubr.bf16.mxu0 0
    %509 = vmatmul.mubr.bf16.gmra.mrb[0].mxu0 %v475
    %v510 = vpop.f32.mrb[0].mxu0
    %v511 = vadd.f32 %v249, %v510
    %v512 = vpop.f32.mrb[0].mxu0
    %v513 = vadd.f32 %v253, %v512
    %v514 = vpop.f32.mrb[0].mxu0
    %v515 = vpop.f32.mrb[0].mxu0
    %516 = vdwg.mxu0
    %517 = vmatprep.subr.bf16.mxu0 %v184
    %518 = vmatpush1.bf16.msra.mxu0 %v183
    %519 = vmatprep.subr.bf16.mxu0 %v188
    %520 = vmatpush1.bf16.msra.mxu0 %v187
    %521 = vmatprep.subr.bf16.mxu0 %v192
    %522 = vmatpush1.bf16.msra.mxu0 %v191
    %523 = vmatprep.subr.bf16.mxu0 %v196
    %524 = vmatpush1.bf16.msra.mxu0 %v195
    %525 = vmatprep.subr.bf16.mxu0 %v200
    %526 = vmatpush1.bf16.msra.mxu0 %v199
    %527 = vmatprep.subr.bf16.mxu0 %v204
    %528 = vmatpush1.bf16.msra.mxu0 %v203
    %529 = vmatprep.subr.bf16.mxu0 %v208
    %530 = vmatpush1.bf16.msra.mxu0 %v207
    %531 = vmatprep.subr.bf16.mxu0 %v212
    %532 = vmatpush1.bf16.msra.mxu0 %v211
    %533 = vmatprep.subr.bf16.mxu0 0
    %534 = vmatpush1.bf16.msra.mxu0 0
    %535 = vmatprep.subr.bf16.mxu0 0
    %536 = vmatpush1.bf16.msra.mxu0 0
    %537 = vmatprep.subr.bf16.mxu0 0
    %538 = vmatpush1.bf16.msra.mxu0 0
    %539 = vmatprep.subr.bf16.mxu0 0
    %540 = vmatpush1.bf16.msra.mxu0 0
    %541 = vmatprep.subr.bf16.mxu0 0
    %542 = vmatpush1.bf16.msra.mxu0 0
    %543 = vmatprep.subr.bf16.mxu0 0
    %544 = vmatpush1.bf16.msra.mxu0 0
    %545 = vmatprep.subr.bf16.mxu0 0
    %546 = vmatpush1.bf16.msra.mxu0 0
    %547 = vmatprep.subr.bf16.mxu0 0
    %548 = vmatpush1.bf16.msra.mxu0 0
    %549 = vmatprep.mubr.bf16.mxu0 0
    %550 = vmatmul.mubr.bf16.gmra.mrb[0].mxu0 %v475
    %v551 = vpop.f32.mrb[0].mxu0
    %v552 = vadd.f32 %v257, %v551
    %v553 = vpop.f32.mrb[0].mxu0
    %v554 = vadd.f32 %v261, %v553
    %v555 = vpop.f32.mrb[0].mxu0
    %v556 = vpop.f32.mrb[0].mxu0
    %557 = vdwg.mxu0
    %v558 = vxor.u32 %v511, 2147483648
    %v559 = vmul.f32 %v558, 1.442695
    %v560 = vpow.pop %v559
    %v561 = vadd.f32 %v560, 1.0
    %v562 = vrcp.pop %v561
    %v563 = vmul.f32 1.0, %v562
    %v564 = vxor.u32 %v513, 2147483648
    %v565 = vmul.f32 %v564, 1.442695
    %v566 = vpow.pop %v565
    %v567 = vadd.f32 %v566, 1.0
    %v568 = vrcp.pop %v567
    %v569 = vmul.f32 1.0, %v568
    %v570 = vmul.f32 %v563, %v554
    %v571 = vadd.f32 %v552, %v570
    %v572 = vtanh.pop %v571
    %v573 = vsub.f32 1.0, %v569
    %v574 = vmul.f32 %v573, %v572
    %v575 = vmul.f32 %v569, %v471
    %v576 = vadd.f32 %v574, %v575
    %577 = vst [vmem:[#allocation7 + $0x2] sm:$0x1] %v576
    %v578 = vld [vmem:[#allocation2 + $0x3] sm:$0x1]
    %v579 = vsel %vm80, %v576, %v578
    %v580 = vpack.c.bf16 %v579, %v579
    %581 = vmatprep.subr.bf16.mxu0 %v182
    %582 = vmatpush1.bf16.msra.mxu0 %v181
    %583 = vmatprep.subr.bf16.mxu0 %v186
    %584 = vmatpush1.bf16.msra.mxu0 %v185
    %585 = vmatprep.subr.bf16.mxu0 %v190
    %586 = vmatpush1.bf16.msra.mxu0 %v189
    %587 = vmatprep.subr.bf16.mxu0 %v194
    %588 = vmatpush1.bf16.msra.mxu0 %v193
    %589 = vmatprep.subr.bf16.mxu0 %v198
    %590 = vmatpush1.bf16.msra.mxu0 %v197
    %591 = vmatprep.subr.bf16.mxu0 %v202
    %592 = vmatpush1.bf16.msra.mxu0 %v201
    %593 = vmatprep.subr.bf16.mxu0 %v206
    %594 = vmatpush1.bf16.msra.mxu0 %v205
    %595 = vmatprep.subr.bf16.mxu0 %v210
    %596 = vmatpush1.bf16.msra.mxu0 %v209
    %597 = vmatprep.subr.bf16.mxu0 0
    %598 = vmatpush1.bf16.msra.mxu0 0
    %599 = vmatprep.subr.bf16.mxu0 0
    %600 = vmatpush1.bf16.msra.mxu0 0
    %601 = vmatprep.subr.bf16.mxu0 0
    %602 = vmatpush1.bf16.msra.mxu0 0
    %603 = vmatprep.subr.bf16.mxu0 0
    %604 = vmatpush1.bf16.msra.mxu0 0
    %605 = vmatprep.subr.bf16.mxu0 0
    %606 = vmatpush1.bf16.msra.mxu0 0
    %607 = vmatprep.subr.bf16.mxu0 0
    %608 = vmatpush1.bf16.msra.mxu0 0
    %609 = vmatprep.subr.bf16.mxu0 0
    %610 = vmatpush1.bf16.msra.mxu0 0
    %611 = vmatprep.subr.bf16.mxu0 0
    %612 = vmatpush1.bf16.msra.mxu0 0
    %613 = vmatprep.mubr.bf16.mxu0 0
    %614 = vmatmul.mubr.bf16.gmra.mrb[0].mxu0 %v580
    %v615 = vpop.f32.mrb[0].mxu0
    %v616 = vadd.f32 %v249, %v615
    %v617 = vpop.f32.mrb[0].mxu0
    %v618 = vadd.f32 %v253, %v617
    %v619 = vpop.f32.mrb[0].mxu0
    %v620 = vpop.f32.mrb[0].mxu0
    %621 = vdwg.mxu0
    %622 = vmatprep.subr.bf16.mxu0 %v184
    %623 = vmatpush1.bf16.msra.mxu0 %v183
    %624 = vmatprep.subr.bf16.mxu0 %v188
    %625 = vmatpush1.bf16.msra.mxu0 %v187
    %626 = vmatprep.subr.bf16.mxu0 %v192
    %627 = vmatpush1.bf16.msra.mxu0 %v191
    %628 = vmatprep.subr.bf16.mxu0 %v196
    %629 = vmatpush1.bf16.msra.mxu0 %v195
    %630 = vmatprep.subr.bf16.mxu0 %v200
    %631 = vmatpush1.bf16.msra.mxu0 %v199
    %632 = vmatprep.subr.bf16.mxu0 %v204
    %633 = vmatpush1.bf16.msra.mxu0 %v203
    %634 = vmatprep.subr.bf16.mxu0 %v208
    %635 = vmatpush1.bf16.msra.mxu0 %v207
    %636 = vmatprep.subr.bf16.mxu0 %v212
    %637 = vmatpush1.bf16.msra.mxu0 %v211
    %638 = vmatprep.subr.bf16.mxu0 0
    %639 = vmatpush1.bf16.msra.mxu0 0
    %640 = vmatprep.subr.bf16.mxu0 0
    %641 = vmatpush1.bf16.msra.mxu0 0
    %642 = vmatprep.subr.bf16.mxu0 0
    %643 = vmatpush1.bf16.msra.mxu0 0
    %644 = vmatprep.subr.bf16.mxu0 0
    %645 = vmatpush1.bf16.msra.mxu0 0
    %646 = vmatprep.subr.bf16.mxu0 0
    %647 = vmatpush1.bf16.msra.mxu0 0
    %648 = vmatprep.subr.bf16.mxu0 0
    %649 = vmatpush1.bf16.msra.mxu0 0
    %650 = vmatprep.subr.bf16.mxu0 0
    %651 = vmatpush1.bf16.msra.mxu0 0
    %652 = vmatprep.subr.bf16.mxu0 0
    %653 = vmatpush1.bf16.msra.mxu0 0
    %654 = vmatprep.mubr.bf16.mxu0 0
    %655 = vmatmul.mubr.bf16.gmra.mrb[0].mxu0 %v580
    %v656 = vpop.f32.mrb[0].mxu0
    %v657 = vadd.f32 %v257, %v656
    %v658 = vpop.f32.mrb[0].mxu0
    %v659 = vadd.f32 %v261, %v658
    %v660 = vpop.f32.mrb[0].mxu0
    %v661 = vpop.f32.mrb[0].mxu0
    %662 = vdwg.mxu0
    %v663 = vxor.u32 %v616, 2147483648
    %v664 = vmul.f32 %v663, 1.442695
    %v665 = vpow.pop %v664
    %v666 = vadd.f32 %v665, 1.0
    %v667 = vrcp.pop %v666
    %v668 = vmul.f32 1.0, %v667
    %v669 = vxor.u32 %v618, 2147483648
    %v670 = vmul.f32 %v669, 1.442695
    %v671 = vpow.pop %v670
    %v672 = vadd.f32 %v671, 1.0
    %v673 = vrcp.pop %v672
    %v674 = vmul.f32 1.0, %v673
    %v675 = vmul.f32 %v668, %v659
    %v676 = vadd.f32 %v657, %v675
    %v677 = vtanh.pop %v676
    %v678 = vsub.f32 1.0, %v674
    %v679 = vmul.f32 %v678, %v677
    %v680 = vmul.f32 %v674, %v576
    %v681 = vadd.f32 %v679, %v680
    %682 = vst [vmem:[#allocation7 + $0x3] sm:$0x1] %v681
    %v683 = vld [vmem:[#allocation2 + $0x4] sm:$0x1]
    %v684 = vsel %vm80, %v681, %v683
    %v685 = vpack.c.bf16 %v684, %v684
    %686 = vmatprep.subr.bf16.mxu0 %v182
    %687 = vmatpush1.bf16.msra.mxu0 %v181
    %688 = vmatprep.subr.bf16.mxu0 %v186
    %689 = vmatpush1.bf16.msra.mxu0 %v185
    %690 = vmatprep.subr.bf16.mxu0 %v190
    %691 = vmatpush1.bf16.msra.mxu0 %v189
    %692 = vmatprep.subr.bf16.mxu0 %v194
    %693 = vmatpush1.bf16.msra.mxu0 %v193
    %694 = vmatprep.subr.bf16.mxu0 %v198
    %695 = vmatpush1.bf16.msra.mxu0 %v197
    %696 = vmatprep.subr.bf16.mxu0 %v202
    %697 = vmatpush1.bf16.msra.mxu0 %v201
    %698 = vmatprep.subr.bf16.mxu0 %v206
    %699 = vmatpush1.bf16.msra.mxu0 %v205
    %700 = vmatprep.subr.bf16.mxu0 %v210
    %701 = vmatpush1.bf16.msra.mxu0 %v209
    %702 = vmatprep.subr.bf16.mxu0 0
    %703 = vmatpush1.bf16.msra.mxu0 0
    %704 = vmatprep.subr.bf16.mxu0 0
    %705 = vmatpush1.bf16.msra.mxu0 0
    %706 = vmatprep.subr.bf16.mxu0 0
    %707 = vmatpush1.bf16.msra.mxu0 0
    %708 = vmatprep.subr.bf16.mxu0 0
    %709 = vmatpush1.bf16.msra.mxu0 0
    %710 = vmatprep.subr.bf16.mxu0 0
    %711 = vmatpush1.bf16.msra.mxu0 0
    %712 = vmatprep.subr.bf16.mxu0 0
    %713 = vmatpush1.bf16.msra.mxu0 0
    %714 = vmatprep.subr.bf16.mxu0 0
    %715 = vmatpush1.bf16.msra.mxu0 0
    %716 = vmatprep.subr.bf16.mxu0 0
    %717 = vmatpush1.bf16.msra.mxu0 0
    %718 = vmatprep.mubr.bf16.mxu0 0
    %719 = vmatmul.mubr.bf16.gmra.mrb[0].mxu0 %v685
    %v720 = vpop.f32.mrb[0].mxu0
    %v721 = vadd.f32 %v249, %v720
    %v722 = vpop.f32.mrb[0].mxu0
    %v723 = vadd.f32 %v253, %v722
    %v724 = vpop.f32.mrb[0].mxu0
    %v725 = vpop.f32.mrb[0].mxu0
    %726 = vdwg.mxu0
    %727 = vmatprep.subr.bf16.mxu0 %v184
    %728 = vmatpush1.bf16.msra.mxu0 %v183
    %729 = vmatprep.subr.bf16.mxu0 %v188
    %730 = vmatpush1.bf16.msra.mxu0 %v187
    %731 = vmatprep.subr.bf16.mxu0 %v192
    %732 = vmatpush1.bf16.msra.mxu0 %v191
    %733 = vmatprep.subr.bf16.mxu0 %v196
    %734 = vmatpush1.bf16.msra.mxu0 %v195
    %735 = vmatprep.subr.bf16.mxu0 %v200
    %736 = vmatpush1.bf16.msra.mxu0 %v199
    %737 = vmatprep.subr.bf16.mxu0 %v204
    %738 = vmatpush1.bf16.msra.mxu0 %v203
    %739 = vmatprep.subr.bf16.mxu0 %v208
    %740 = vmatpush1.bf16.msra.mxu0 %v207
    %741 = vmatprep.subr.bf16.mxu0 %v212
    %742 = vmatpush1.bf16.msra.mxu0 %v211
    %743 = vmatprep.subr.bf16.mxu0 0
    %744 = vmatpush1.bf16.msra.mxu0 0
    %745 = vmatprep.subr.bf16.mxu0 0
    %746 = vmatpush1.bf16.msra.mxu0 0
    %747 = vmatprep.subr.bf16.mxu0 0
    %748 = vmatpush1.bf16.msra.mxu0 0
    %749 = vmatprep.subr.bf16.mxu0 0
    %750 = vmatpush1.bf16.msra.mxu0 0
    %751 = vmatprep.subr.bf16.mxu0 0
    %752 = vmatpush1.bf16.msra.mxu0 0
    %753 = vmatprep.subr.bf16.mxu0 0
    %754 = vmatpush1.bf16.msra.mxu0 0
    %755 = vmatprep.subr.bf16.mxu0 0
    %756 = vmatpush1.bf16.msra.mxu0 0
    %757 = vmatprep.subr.bf16.mxu0 0
    %758 = vmatpush1.bf16.msra.mxu0 0
    %759 = vmatprep.mubr.bf16.mxu0 0
    %760 = vmatmul.mubr.bf16.gmra.mrb[0].mxu0 %v685
    %v761 = vpop.f32.mrb[0].mxu0
    %v762 = vadd.f32 %v257, %v761
    %v763 = vpop.f32.mrb[0].mxu0
    %v764 = vadd.f32 %v261, %v763
    %v765 = vpop.f32.mrb[0].mxu0
    %v766 = vpop.f32.mrb[0].mxu0
    %767 = vdwg.mxu0
    %v768 = vxor.u32 %v721, 2147483648
    %v769 = vmul.f32 %v768, 1.442695
    %v770 = vpow.pop %v769
    %v771 = vadd.f32 %v770, 1.0
    %v772 = vrcp.pop %v771
    %v773 = vmul.f32 1.0, %v772
    %v774 = vxor.u32 %v723, 2147483648
    %v775 = vmul.f32 %v774, 1.442695
    %v776 = vpow.pop %v775
    %v777 = vadd.f32 %v776, 1.0
    %v778 = vrcp.pop %v777
    %v779 = vmul.f32 1.0, %v778
    %v780 = vmul.f32 %v773, %v764
    %v781 = vadd.f32 %v762, %v780
    %v782 = vtanh.pop %v781
    %v783 = vsub.f32 1.0, %v779
    %v784 = vmul.f32 %v783, %v782
    %v785 = vmul.f32 %v779, %v681
    %v786 = vadd.f32 %v784, %v785
    %787 = vst [vmem:[#allocation7 + $0x4] sm:$0x1] %v786
    %v788 = vld [vmem:[#allocation2 + $0x5] sm:$0x1]
    %v789 = vsel %vm80, %v786, %v788
    %v790 = vpack.c.bf16 %v789, %v789
    %791 = vmatprep.subr.bf16.mxu0 %v182
    %792 = vmatpush1.bf16.msra.mxu0 %v181
    %793 = vmatprep.subr.bf16.mxu0 %v186
    %794 = vmatpush1.bf16.msra.mxu0 %v185
    %795 = vmatprep.subr.bf16.mxu0 %v190
    %796 = vmatpush1.bf16.msra.mxu0 %v189
    %797 = vmatprep.subr.bf16.mxu0 %v194
    %798 = vmatpush1.bf16.msra.mxu0 %v193
    %799 = vmatprep.subr.bf16.mxu0 %v198
    %800 = vmatpush1.bf16.msra.mxu0 %v197
    %801 = vmatprep.subr.bf16.mxu0 %v202
    %802 = vmatpush1.bf16.msra.mxu0 %v201
    %803 = vmatprep.subr.bf16.mxu0 %v206
    %804 = vmatpush1.bf16.msra.mxu0 %v205
    %805 = vmatprep.subr.bf16.mxu0 %v210
    %806 = vmatpush1.bf16.msra.mxu0 %v209
    %807 = vmatprep.subr.bf16.mxu0 0
    %808 = vmatpush1.bf16.msra.mxu0 0
    %809 = vmatprep.subr.bf16.mxu0 0
    %810 = vmatpush1.bf16.msra.mxu0 0
    %811 = vmatprep.subr.bf16.mxu0 0
    %812 = vmatpush1.bf16.msra.mxu0 0
    %813 = vmatprep.subr.bf16.mxu0 0
    %814 = vmatpush1.bf16.msra.mxu0 0
    %815 = vmatprep.subr.bf16.mxu0 0
    %816 = vmatpush1.bf16.msra.mxu0 0
    %817 = vmatprep.subr.bf16.mxu0 0
    %818 = vmatpush1.bf16.msra.mxu0 0
    %819 = vmatprep.subr.bf16.mxu0 0
    %820 = vmatpush1.bf16.msra.mxu0 0
    %821 = vmatprep.subr.bf16.mxu0 0
    %822 = vmatpush1.bf16.msra.mxu0 0
    %823 = vmatprep.mubr.bf16.mxu0 0
    %824 = vmatmul.mubr.bf16.gmra.mrb[0].mxu0 %v790
    %v825 = vpop.f32.mrb[0].mxu0
    %v826 = vadd.f32 %v249, %v825
    %v827 = vpop.f32.mrb[0].mxu0
    %v828 = vadd.f32 %v253, %v827
    %v829 = vpop.f32.mrb[0].mxu0
    %v830 = vpop.f32.mrb[0].mxu0
    %831 = vdwg.mxu0
    %832 = vmatprep.subr.bf16.mxu0 %v184
    %833 = vmatpush1.bf16.msra.mxu0 %v183
    %834 = vmatprep.subr.bf16.mxu0 %v188
    %835 = vmatpush1.bf16.msra.mxu0 %v187
    %836 = vmatprep.subr.bf16.mxu0 %v192
    %837 = vmatpush1.bf16.msra.mxu0 %v191
    %838 = vmatprep.subr.bf16.mxu0 %v196
    %839 = vmatpush1.bf16.msra.mxu0 %v195
    %840 = vmatprep.subr.bf16.mxu0 %v200
    %841 = vmatpush1.bf16.msra.mxu0 %v199
    %842 = vmatprep.subr.bf16.mxu0 %v204
    %843 = vmatpush1.bf16.msra.mxu0 %v203
    %844 = vmatprep.subr.bf16.mxu0 %v208
    %845 = vmatpush1.bf16.msra.mxu0 %v207
    %846 = vmatprep.subr.bf16.mxu0 %v212
    %847 = vmatpush1.bf16.msra.mxu0 %v211
    %848 = vmatprep.subr.bf16.mxu0 0
    %849 = vmatpush1.bf16.msra.mxu0 0
    %850 = vmatprep.subr.bf16.mxu0 0
    %851 = vmatpush1.bf16.msra.mxu0 0
    %852 = vmatprep.subr.bf16.mxu0 0
    %853 = vmatpush1.bf16.msra.mxu0 0
    %854 = vmatprep.subr.bf16.mxu0 0
    %855 = vmatpush1.bf16.msra.mxu0 0
    %856 = vmatprep.subr.bf16.mxu0 0
    %857 = vmatpush1.bf16.msra.mxu0 0
    %858 = vmatprep.subr.bf16.mxu0 0
    %859 = vmatpush1.bf16.msra.mxu0 0
    %860 = vmatprep.subr.bf16.mxu0 0
    %861 = vmatpush1.bf16.msra.mxu0 0
    %862 = vmatprep.subr.bf16.mxu0 0
    %863 = vmatpush1.bf16.msra.mxu0 0
    %864 = vmatprep.mubr.bf16.mxu0 0
    %865 = vmatmul.mubr.bf16.gmra.mrb[0].mxu0 %v790
    %v866 = vpop.f32.mrb[0].mxu0
    %v867 = vadd.f32 %v257, %v866
    %v868 = vpop.f32.mrb[0].mxu0
    %v869 = vadd.f32 %v261, %v868
    %v870 = vpop.f32.mrb[0].mxu0
    %v871 = vpop.f32.mrb[0].mxu0
    %872 = vdwg.mxu0
    %v873 = vxor.u32 %v826, 2147483648
    %v874 = vmul.f32 %v873, 1.442695
    %v875 = vpow.pop %v874
    %v876 = vadd.f32 %v875, 1.0
    %v877 = vrcp.pop %v876
    %v878 = vmul.f32 1.0, %v877
    %v879 = vxor.u32 %v828, 2147483648
    %v880 = vmul.f32 %v879, 1.442695
    %v881 = vpow.pop %v880
    %v882 = vadd.f32 %v881, 1.0
    %v883 = vrcp.pop %v882
    %v884 = vmul.f32 1.0, %v883
    %v885 = vmul.f32 %v878, %v869
    %v886 = vadd.f32 %v867, %v885
    %v887 = vtanh.pop %v886
    %v888 = vsub.f32 1.0, %v884
    %v889 = vmul.f32 %v888, %v887
    %v890 = vmul.f32 %v884, %v786
    %v891 = vadd.f32 %v889, %v890
    %892 = vst [vmem:[#allocation7 + $0x5] sm:$0x1] %v891
    %v893 = vld [vmem:[#allocation2 + $0x6] sm:$0x1]
    %v894 = vsel %vm80, %v891, %v893
    %v895 = vpack.c.bf16 %v894, %v894
    %896 = vmatprep.subr.bf16.mxu0 %v182
    %897 = vmatpush1.bf16.msra.mxu0 %v181
    %898 = vmatprep.subr.bf16.mxu0 %v186
    %899 = vmatpush1.bf16.msra.mxu0 %v185
    %900 = vmatprep.subr.bf16.mxu0 %v190
    %901 = vmatpush1.bf16.msra.mxu0 %v189
    %902 = vmatprep.subr.bf16.mxu0 %v194
    %903 = vmatpush1.bf16.msra.mxu0 %v193
    %904 = vmatprep.subr.bf16.mxu0 %v198
    %905 = vmatpush1.bf16.msra.mxu0 %v197
    %906 = vmatprep.subr.bf16.mxu0 %v202
    %907 = vmatpush1.bf16.msra.mxu0 %v201
    %908 = vmatprep.subr.bf16.mxu0 %v206
    %909 = vmatpush1.bf16.msra.mxu0 %v205
    %910 = vmatprep.subr.bf16.mxu0 %v210
    %911 = vmatpush1.bf16.msra.mxu0 %v209
    %912 = vmatprep.subr.bf16.mxu0 0
    %913 = vmatpush1.bf16.msra.mxu0 0
    %914 = vmatprep.subr.bf16.mxu0 0
    %915 = vmatpush1.bf16.msra.mxu0 0
    %916 = vmatprep.subr.bf16.mxu0 0
    %917 = vmatpush1.bf16.msra.mxu0 0
    %918 = vmatprep.subr.bf16.mxu0 0
    %919 = vmatpush1.bf16.msra.mxu0 0
    %920 = vmatprep.subr.bf16.mxu0 0
    %921 = vmatpush1.bf16.msra.mxu0 0
    %922 = vmatprep.subr.bf16.mxu0 0
    %923 = vmatpush1.bf16.msra.mxu0 0
    %924 = vmatprep.subr.bf16.mxu0 0
    %925 = vmatpush1.bf16.msra.mxu0 0
    %926 = vmatprep.subr.bf16.mxu0 0
    %927 = vmatpush1.bf16.msra.mxu0 0
    %928 = vmatprep.mubr.bf16.mxu0 0
    %929 = vmatmul.mubr.bf16.gmra.mrb[0].mxu0 %v895
    %v930 = vpop.f32.mrb[0].mxu0
    %v931 = vadd.f32 %v249, %v930
    %v932 = vpop.f32.mrb[0].mxu0
    %v933 = vadd.f32 %v253, %v932
    %v934 = vpop.f32.mrb[0].mxu0
    %v935 = vpop.f32.mrb[0].mxu0
    %936 = vdwg.mxu0
    %937 = vmatprep.subr.bf16.mxu0 %v184
    %938 = vmatpush1.bf16.msra.mxu0 %v183
    %939 = vmatprep.subr.bf16.mxu0 %v188
    %940 = vmatpush1.bf16.msra.mxu0 %v187
    %941 = vmatprep.subr.bf16.mxu0 %v192
    %942 = vmatpush1.bf16.msra.mxu0 %v191
    %943 = vmatprep.subr.bf16.mxu0 %v196
    %944 = vmatpush1.bf16.msra.mxu0 %v195
    %945 = vmatprep.subr.bf16.mxu0 %v200
    %946 = vmatpush1.bf16.msra.mxu0 %v199
    %947 = vmatprep.subr.bf16.mxu0 %v204
    %948 = vmatpush1.bf16.msra.mxu0 %v203
    %949 = vmatprep.subr.bf16.mxu0 %v208
    %950 = vmatpush1.bf16.msra.mxu0 %v207
    %951 = vmatprep.subr.bf16.mxu0 %v212
    %952 = vmatpush1.bf16.msra.mxu0 %v211
    %953 = vmatprep.subr.bf16.mxu0 0
    %954 = vmatpush1.bf16.msra.mxu0 0
    %955 = vmatprep.subr.bf16.mxu0 0
    %956 = vmatpush1.bf16.msra.mxu0 0
    %957 = vmatprep.subr.bf16.mxu0 0
    %958 = vmatpush1.bf16.msra.mxu0 0
    %959 = vmatprep.subr.bf16.mxu0 0
    %960 = vmatpush1.bf16.msra.mxu0 0
    %961 = vmatprep.subr.bf16.mxu0 0
    %962 = vmatpush1.bf16.msra.mxu0 0
    %963 = vmatprep.subr.bf16.mxu0 0
    %964 = vmatpush1.bf16.msra.mxu0 0
    %965 = vmatprep.subr.bf16.mxu0 0
    %966 = vmatpush1.bf16.msra.mxu0 0
    %967 = vmatprep.subr.bf16.mxu0 0
    %968 = vmatpush1.bf16.msra.mxu0 0
    %969 = vmatprep.mubr.bf16.mxu0 0
    %970 = vmatmul.mubr.bf16.gmra.mrb[0].mxu0 %v895
    %v971 = vpop.f32.mrb[0].mxu0
    %v972 = vadd.f32 %v257, %v971
    %v973 = vpop.f32.mrb[0].mxu0
    %v974 = vadd.f32 %v261, %v973
    %v975 = vpop.f32.mrb[0].mxu0
    %v976 = vpop.f32.mrb[0].mxu0
    %977 = vdwg.mxu0
    %v978 = vxor.u32 %v931, 2147483648
    %v979 = vmul.f32 %v978, 1.442695
    %v980 = vpow.pop %v979
    %v981 = vadd.f32 %v980, 1.0
    %v982 = vrcp.pop %v981
    %v983 = vmul.f32 1.0, %v982
    %v984 = vxor.u32 %v933, 2147483648
    %v985 = vmul.f32 %v984, 1.442695
    %v986 = vpow.pop %v985
    %v987 = vadd.f32 %v986, 1.0
    %v988 = vrcp.pop %v987
    %v989 = vmul.f32 1.0, %v988
    %v990 = vmul.f32 %v983, %v974
    %v991 = vadd.f32 %v972, %v990
    %v992 = vtanh.pop %v991
    %v993 = vsub.f32 1.0, %v989
    %v994 = vmul.f32 %v993, %v992
    %v995 = vmul.f32 %v989, %v891
    %v996 = vadd.f32 %v994, %v995
    %997 = vst [vmem:[#allocation7 + $0x6] sm:$0x1] %v996
    %v998 = vld [vmem:[#allocation2 + $0x7] sm:$0x1]
    %v999 = vsel %vm80, %v996, %v998
    %v1000 = vpack.c.bf16 %v999, %v999
    %1001 = vmatprep.subr.bf16.mxu0 %v182
    %1002 = vmatpush1.bf16.msra.mxu0 %v181
    %1003 = vmatprep.subr.bf16.mxu0 %v186
    %1004 = vmatpush1.bf16.msra.mxu0 %v185
    %1005 = vmatprep.subr.bf16.mxu0 %v190
    %1006 = vmatpush1.bf16.msra.mxu0 %v189
    %1007 = vmatprep.subr.bf16.mxu0 %v194
    %1008 = vmatpush1.bf16.msra.mxu0 %v193
    %1009 = vmatprep.subr.bf16.mxu0 %v198
    %1010 = vmatpush1.bf16.msra.mxu0 %v197
    %1011 = vmatprep.subr.bf16.mxu0 %v202
    %1012 = vmatpush1.bf16.msra.mxu0 %v201
    %1013 = vmatprep.subr.bf16.mxu0 %v206
    %1014 = vmatpush1.bf16.msra.mxu0 %v205
    %1015 = vmatprep.subr.bf16.mxu0 %v210
    %1016 = vmatpush1.bf16.msra.mxu0 %v209
    %1017 = vmatprep.subr.bf16.mxu0 0
    %1018 = vmatpush1.bf16.msra.mxu0 0
    %1019 = vmatprep.subr.bf16.mxu0 0
    %1020 = vmatpush1.bf16.msra.mxu0 0
    %1021 = vmatprep.subr.bf16.mxu0 0
    %1022 = vmatpush1.bf16.msra.mxu0 0
    %1023 = vmatprep.subr.bf16.mxu0 0
    %1024 = vmatpush1.bf16.msra.mxu0 0
    %1025 = vmatprep.subr.bf16.mxu0 0
    %1026 = vmatpush1.bf16.msra.mxu0 0
    %1027 = vmatprep.subr.bf16.mxu0 0
    %1028 = vmatpush1.bf16.msra.mxu0 0
    %1029 = vmatprep.subr.bf16.mxu0 0
    %1030 = vmatpush1.bf16.msra.mxu0 0
    %1031 = vmatprep.subr.bf16.mxu0 0
    %1032 = vmatpush1.bf16.msra.mxu0 0
    %1033 = vmatprep.mubr.bf16.mxu0 0
    %1034 = vmatmul.mubr.bf16.gmra.mrb[0].mxu0 %v1000
    %v1035 = vpop.f32.mrb[0].mxu0
    %v1036 = vadd.f32 %v249, %v1035
    %v1037 = vpop.f32.mrb[0].mxu0
    %v1038 = vadd.f32 %v253, %v1037
    %v1039 = vpop.f32.mrb[0].mxu0
    %v1040 = vpop.f32.mrb[0].mxu0
    %1041 = vdwg.mxu0
    %1042 = vmatprep.subr.bf16.mxu0 %v184
    %1043 = vmatpush1.bf16.msra.mxu0 %v183
    %1044 = vmatprep.subr.bf16.mxu0 %v188
    %1045 = vmatpush1.bf16.msra.mxu0 %v187
    %1046 = vmatprep.subr.bf16.mxu0 %v192
    %1047 = vmatpush1.bf16.msra.mxu0 %v191
    %1048 = vmatprep.subr.bf16.mxu0 %v196
    %1049 = vmatpush1.bf16.msra.mxu0 %v195
    %1050 = vmatprep.subr.bf16.mxu0 %v200
    %1051 = vmatpush1.bf16.msra.mxu0 %v199
    %1052 = vmatprep.subr.bf16.mxu0 %v204
    %1053 = vmatpush1.bf16.msra.mxu0 %v203
    %1054 = vmatprep.subr.bf16.mxu0 %v208
    %1055 = vmatpush1.bf16.msra.mxu0 %v207
    %1056 = vmatprep.subr.bf16.mxu0 %v212
    %1057 = vmatpush1.bf16.msra.mxu0 %v211
    %1058 = vmatprep.subr.bf16.mxu0 0
    %1059 = vmatpush1.bf16.msra.mxu0 0
    %1060 = vmatprep.subr.bf16.mxu0 0
    %1061 = vmatpush1.bf16.msra.mxu0 0
    %1062 = vmatprep.subr.bf16.mxu0 0
    %1063 = vmatpush1.bf16.msra.mxu0 0
    %1064 = vmatprep.subr.bf16.mxu0 0
    %1065 = vmatpush1.bf16.msra.mxu0 0
    %1066 = vmatprep.subr.bf16.mxu0 0
    %1067 = vmatpush1.bf16.msra.mxu0 0
    %1068 = vmatprep.subr.bf16.mxu0 0
    %1069 = vmatpush1.bf16.msra.mxu0 0
    %1070 = vmatprep.subr.bf16.mxu0 0
    %1071 = vmatpush1.bf16.msra.mxu0 0
    %1072 = vmatprep.subr.bf16.mxu0 0
    %1073 = vmatpush1.bf16.msra.mxu0 0
    %1074 = vmatprep.mubr.bf16.mxu0 0
    %1075 = vmatmul.mubr.bf16.gmra.mrb[0].mxu0 %v1000
    %v1076 = vpop.f32.mrb[0].mxu0
    %v1077 = vadd.f32 %v257, %v1076
    %v1078 = vpop.f32.mrb[0].mxu0
    %v1079 = vadd.f32 %v261, %v1078
    %v1080 = vpop.f32.mrb[0].mxu0
    %v1081 = vpop.f32.mrb[0].mxu0
    %1082 = vdwg.mxu0
    %v1083 = vxor.u32 %v1036, 2147483648
    %v1084 = vmul.f32 %v1083, 1.442695
    %v1085 = vpow.pop %v1084
    %v1086 = vadd.f32 %v1085, 1.0
    %v1087 = vrcp.pop %v1086
    %v1088 = vmul.f32 1.0, %v1087
    %v1089 = vxor.u32 %v1038, 2147483648
    %v1090 = vmul.f32 %v1089, 1.442695
    %v1091 = vpow.pop %v1090
    %v1092 = vadd.f32 %v1091, 1.0
    %v1093 = vrcp.pop %v1092
    %v1094 = vmul.f32 1.0, %v1093
    %v1095 = vmul.f32 %v1088, %v1079
    %v1096 = vadd.f32 %v1077, %v1095
    %v1097 = vtanh.pop %v1096
    %v1098 = vsub.f32 1.0, %v1094
    %v1099 = vmul.f32 %v1098, %v1097
    %v1100 = vmul.f32 %v1094, %v996
    %v1101 = vadd.f32 %v1099, %v1100
    %1102 = vst [vmem:[#allocation7 + $0x7] sm:$0x1] %v1101
    // Predicated region
    $region26: #{tpu_custom_call.1} parent=1 // pred_check
      _
    $region27: #{tpu_custom_call.1} parent=1 // pred_check_branch
      %1104 = sbr.rel (0) target = $region29
    $region28: #{tpu_custom_call.1} parent=1 // pred_region
      %s1106 = ssub.s32 128, 128
      %1107 = vsyncadd [#allocation4], %s1106
      %s1109 = sshll.u32 [#allocation7], 4
      %s1110 = int_to_ptr.vmem [resolvable:$true] %s1109
      %1112 = dma.vmem_to_hbm [thread:$0]  %s1110, 128, %s4, [#allocation4]
    $region29: #{tpu_custom_call.1} parent=1 // pred_fallthru
      _
    // Predicated region
    $region30: #{tpu_custom_call.1} parent=1 // pred_check
      _
    $region31: #{tpu_custom_call.1} parent=1 // pred_check_branch
      %1114 = sbr.rel (0) target = $region33
    $region32: #{tpu_custom_call.1} parent=1 // pred_region
      %1115 = dma.done [#allocation4], 128
    $region33: #{tpu_custom_call.1} parent=1 // pred_fallthru
      _
    %1116 = vsyncpa [#allocation3], 1
    %1117 = vsyncpa [#allocation6], 1
    %1118 = vsyncpa [#allocation4], 1

</llo_original>
